<compile_context>
chip_gen: v5e
topology: v5e:2x2
jax: 0.10.0
libtpu: 0.0.40
codegen_flags: <defaults>
</compile_context>

<pallas_src>
import math
import functools

import jax
import jax.numpy as jnp
from jax.experimental import pallas as pl
from jax.experimental.pallas import tpu as pltpu

LANE = 128
WEIGHT_RESIDENT_BYTES = 6 * 1024 * 1024   # keep the whole (K, N) weight in VMEM when <= this


def _default_vmem_limit():
    # Generation-aware scoped-VMEM budget: v7x has 64 MiB/TC, v5e/v6e have 128 MiB.
    phys = 128 * 1024 * 1024
    try:
        phys = int(getattr(pltpu.get_tpu_info(), "vmem_capacity_bytes", phys))
    except Exception:
        pass
    return (32 if phys <= 64 * 1024 * 1024 else 48) * 1024 * 1024


VMEM_LIMIT = _default_vmem_limit()


def _cparams(dimension_semantics):
    return pltpu.CompilerParams(dimension_semantics=dimension_semantics,
                                vmem_limit_bytes=VMEM_LIMIT)


def _round_up(x, m):
    return ((x + m - 1) // m) * m


# ----------------------------- Pallas kernels ------------------------------ #

def matmul_resident_kernel(x_ref, w_ref, b_ref, o_ref, *, activation):
    # Weight-resident GEMM: full (K, N) weight in VMEM, grid iterates over M only.
    y = jnp.dot(x_ref[...], w_ref[...], preferred_element_type=jnp.float32) + b_ref[...]
    if activation == "gelu":
        y = jax.nn.gelu(y, approximate=True)
    o_ref[...] = y.astype(o_ref.dtype)


def matmul_kernel(x_ref, w_ref, b_ref, o_ref, acc_ref, *, activation):
    # General tiled GEMM: grid (M/tm, N/tn, K/tk), K last ("arbitrary"), f32 accumulator.
    @pl.when(pl.program_id(2) == 0)
    def _():
        acc_ref[...] = jnp.zeros_like(acc_ref)

    acc_ref[...] += jnp.dot(x_ref[...], w_ref[...], preferred_element_type=jnp.float32)

    @pl.when(pl.program_id(2) == pl.num_programs(2) - 1)
    def _():
        y = acc_ref[...] + b_ref[...]
        if activation == "gelu":
            y = jax.nn.gelu(y, approximate=True)
        o_ref[...] = y.astype(o_ref.dtype)


def matmul_res_ln_kernel(x_ref, w_ref, b_ref, res_ref, g_ref, be_ref, o_ref, acc_ref):
    # o = LayerNorm(x @ w + b + residual); grid (M/tm, K/tk), N is one full block.
    @pl.when(pl.program_id(1) == 0)
    def _():
        acc_ref[...] = jnp.zeros_like(acc_ref)

    acc_ref[...] += jnp.dot(x_ref[...], w_ref[...], preferred_element_type=jnp.float32)

    @pl.when(pl.program_id(1) == pl.num_programs(1) - 1)
    def _():
        y = acc_ref[...] + b_ref[...] + res_ref[...].astype(jnp.float32)
        mu = jnp.mean(y, axis=-1, keepdims=True)
        var = jnp.mean(jnp.square(y - mu), axis=-1, keepdims=True)
        o_ref[...] = ((y - mu) * jax.lax.rsqrt(var + 1e-12) * g_ref[...]
                      + be_ref[...]).astype(o_ref.dtype)


def layernorm_kernel(x_ref, g_ref, b_ref, o_ref):
    x = x_ref[...].astype(jnp.float32)
    mu = jnp.mean(x, axis=-1, keepdims=True)
    var = jnp.mean(jnp.square(x - mu), axis=-1, keepdims=True)
    o_ref[...] = ((x - mu) * jax.lax.rsqrt(var + 1e-12) * g_ref[...]
                  + b_ref[...]).astype(o_ref.dtype)


def attention_kernel(q_ref, k_ref, v_ref, bias_ref, o_ref):
    # One (batch, head-group) tile per grid step.  bf16 MXU operands, f32 accumulate.
    # Heads are a batched contraction (no per-head Python loop, no concatenate); the
    # 1/sqrt(d) scale is already folded into the Q projection weights.
    q = q_ref[0]                          # (hg, S, d) bf16
    k = k_ref[0]                          # (hg, S, d) bf16
    v = v_ref[0]                          # (hg, S, d) bf16
    bias = bias_ref[...]                  # (1, 1, S) f32 additive key mask

    s = jnp.einsum("hqd,hkd->hqk", q, k,
                   preferred_element_type=jnp.float32)           # (hg, S, S) f32
    s = s + bias                                                  # broadcast heads/query rows
    s = s - jnp.max(s, axis=-1, keepdims=True)
    p = jnp.exp(s)
    p = p / jnp.sum(p, axis=-1, keepdims=True)                    # exact divide (numerics)
    ctx = jnp.einsum("hqk,hkd->hqd", p.astype(v.dtype), v,
                     preferred_element_type=jnp.float32)          # (hg, S, d) f32
    o_ref[0] = ctx.astype(o_ref.dtype)
    # TODO(synk): for S >= 512, tile over key blocks with an online (flash-style)
    # softmax instead of materializing the full (hg, S, S) score tile.


# ------------------------------ Pallas wrappers ----------------------------- #

def pallas_matmul(x, w, b, *, activation=None, out_dtype=jnp.bfloat16,
                  tm=512, tn=512, tk=512):
    M, K = x.shape
    N = w.shape[1]
    b = b.reshape(1, N).astype(jnp.float32)

    tm = min(tm, _round_up(M, 8))
    Mp = _round_up(M, tm)
    if Mp != M:
        x = jnp.pad(x, ((0, Mp - M), (0, 0)))

    resident = K * N * w.dtype.itemsize <= WEIGHT_RESIDENT_BYTES
    if resident:
        out = pl.pallas_call(
            functools.partial(matmul_resident_kernel, activation=activation),
            out_shape=jax.ShapeDtypeStruct((Mp, N), out_dtype),
            grid=(Mp // tm,),
            in_specs=[
                pl.BlockSpec((tm, K), lambda i: (i, 0)),
                pl.BlockSpec((K, N), lambda i: (0, 0)),
                pl.BlockSpec((1, N), lambda i: (0, 0)),
            ],
            out_specs=pl.BlockSpec((tm, N), lambda i: (i, 0)),
            compiler_params=_cparams(("parallel",)),
        )(x, w, b)
    else:
        tn = min(tn, _round_up(N, LANE))
        tk = min(tk, _round_up(K, LANE))
        Np, Kp = _round_up(N, tn), _round_up(K, tk)
        if Kp != K:
            x = jnp.pad(x, ((0, 0), (0, Kp - K)))
            w = jnp.pad(w, ((0, Kp - K), (0, 0)))
        if Np != N:
            w = jnp.pad(w, ((0, 0), (0, Np - N)))
            b = jnp.pad(b, ((0, 0), (0, Np - N)))
        out = pl.pallas_call(
            functools.partial(matmul_kernel, activation=activation),
            out_shape=jax.ShapeDtypeStruct((Mp, Np), out_dtype),
            grid=(Mp // tm, Np // tn, Kp // tk),
            in_specs=[
                pl.BlockSpec((tm, tk), lambda i, j, k: (i, k)),
                pl.BlockSpec((tk, tn), lambda i, j, k: (k, j)),
                pl.BlockSpec((1, tn), lambda i, j, k: (0, j)),
            ],
            out_specs=pl.BlockSpec((tm, tn), lambda i, j, k: (i, j)),
            scratch_shapes=[pltpu.VMEM((tm, tn), jnp.float32)],
            compiler_params=_cparams(("parallel", "parallel", "arbitrary")),
        )(x, w, b)
    return out[:M, :N]


def pallas_matmul_res_ln(x, w, b, residual, gamma, beta, *,
                         out_dtype=jnp.bfloat16, tm=512, tk=512):
    M, K = x.shape
    N = w.shape[1]
    tm = min(tm, _round_up(M, 8))
    Mp = _round_up(M, tm)

    resident = K * N * w.dtype.itemsize <= WEIGHT_RESIDENT_BYTES
    tk = K if resident else min(tk, _round_up(K, LANE))
    Kp = _round_up(K, tk)

    if Mp != M:
        x = jnp.pad(x, ((0, Mp - M), (0, 0)))
        residual = jnp.pad(residual, ((0, Mp - M), (0, 0)))
    if Kp != K:
        x = jnp.pad(x, ((0, 0), (0, Kp - K)))
        w = jnp.pad(w, ((0, Kp - K), (0, 0)))

    out = pl.pallas_call(
        matmul_res_ln_kernel,
        out_shape=jax.ShapeDtypeStruct((Mp, N), out_dtype),
        grid=(Mp // tm, Kp // tk),   # degenerate N axis removed: LN needs the full row anyway
        in_specs=[
            pl.BlockSpec((tm, tk), lambda i, k: (i, k)),
            pl.BlockSpec((tk, N), lambda i, k: (k, 0)),
            pl.BlockSpec((1, N), lambda i, k: (0, 0)),
            pl.BlockSpec((tm, N), lambda i, k: (i, 0)),
            pl.BlockSpec((1, N), lambda i, k: (0, 0)),
            pl.BlockSpec((1, N), lambda i, k: (0, 0)),
        ],
        out_specs=pl.BlockSpec((tm, N), lambda i, k: (i, 0)),
        scratch_shapes=[pltpu.VMEM((tm, N), jnp.float32)],
        compiler_params=_cparams(("parallel", "arbitrary")),
    )(x, w, b.reshape(1, N).astype(jnp.float32), residual,
      gamma.reshape(1, N).astype(jnp.float32), beta.reshape(1, N).astype(jnp.float32))
    return out[:M]


def pallas_layernorm(x, gamma, beta, *, out_dtype=jnp.bfloat16, tm=512):
    M, H = x.shape
    tm = min(tm, _round_up(M, 8))
    Mp = _round_up(M, tm)
    if Mp != M:
        x = jnp.pad(x, ((0, Mp - M), (0, 0)))
    out = pl.pallas_call(
        layernorm_kernel,
        out_shape=jax.ShapeDtypeStruct((Mp, H), out_dtype),
        grid=(Mp // tm,),
        in_specs=[
            pl.BlockSpec((tm, H), lambda i: (i, 0)),
            pl.BlockSpec((1, H), lambda i: (0, 0)),
            pl.BlockSpec((1, H), lambda i: (0, 0)),
        ],
        out_specs=pl.BlockSpec((tm, H), lambda i: (i, 0)),
        compiler_params=_cparams(("parallel",)),
    )(x, gamma.reshape(1, H).astype(jnp.float32), beta.reshape(1, H).astype(jnp.float32))
    return out[:M]


def pallas_attention(q, k, v, mask_bias, *, head_group):
    # q/k/v: (B, heads, S, d) bf16 (1/sqrt(d) folded into q); mask_bias: (B, 1, S) f32.
    B, H, S, D = q.shape
    G = H // head_group
    return pl.pallas_call(
        attention_kernel,
        out_shape=jax.ShapeDtypeStruct((B, H, S, D), jnp.bfloat16),
        grid=(B, G),
        in_specs=[
            pl.BlockSpec((1, head_group, S, D), lambda b, g: (b, g, 0, 0)),
            pl.BlockSpec((1, head_group, S, D), lambda b, g: (b, g, 0, 0)),
            pl.BlockSpec((1, head_group, S, D), lambda b, g: (b, g, 0, 0)),
            pl.BlockSpec((1, 1, S), lambda b, g: (b, 0, 0)),
        ],
        out_specs=pl.BlockSpec((1, head_group, S, D), lambda b, g: (b, g, 0, 0)),
        compiler_params=_cparams(("parallel", "parallel")),
    )(q, k, v, mask_bias)


# --------------------------- model / parameter setup ------------------------ #

def init_params(key, *, vocab, max_pos, hidden, heads, layers, ffn, num_labels):
    ks = iter(jax.random.split(key, 8 + layers * 8))
    std = 0.02
    d = hidden // heads
    qscale = 1.0 / math.sqrt(d)

    def nrm(shape):
        return (std * jax.random.normal(next(ks), shape)).astype(jnp.bfloat16)

    n_pad = max(LANE, _round_up(num_labels, LANE))
    cls_w = jnp.zeros((hidden, n_pad), jnp.float32).at[:, :num_labels].set(
        std * jax.random.normal(next(ks), (hidden, num_labels)))

    p = {
        "word_emb": nrm((vocab, hidden)),
        "pos_emb": nrm((max_pos, hidden)),
        "type_emb": nrm((2, hidden)),
        "emb_ln_g": jnp.ones((hidden,), jnp.float32),
        "emb_ln_b": jnp.zeros((hidden,), jnp.float32),
        "layers": [],
        "cls_w": cls_w.astype(jnp.bfloat16),          # lane-padded classifier weight
        "cls_b": jnp.zeros((n_pad,), jnp.float32),
    }
    for _ in range(layers):
        # Fused QKV projection: columns [wq | wk | wv]; the attention 1/sqrt(d) scale
        # is folded into wq (a loaded checkpoint's bq would need the same scaling).
        wq = (std * qscale) * jax.random.normal(next(ks), (hidden, hidden))
        wk = std * jax.random.normal(next(ks), (hidden, hidden))
        wv = std * jax.random.normal(next(ks), (hidden, hidden))
        lp = {
            "wqkv": jnp.concatenate([wq, wk, wv], axis=1).astype(jnp.bfloat16),
            "bqkv": jnp.zeros((3 * hidden,), jnp.float32),
            "wo": nrm((hidden, hidden)), "bo": jnp.zeros((hidden,), jnp.float32),
            "ln1_g": jnp.ones((hidden,), jnp.float32),
            "ln1_b": jnp.zeros((hidden,), jnp.float32),
            "w1": nrm((hidden, ffn)), "b1": jnp.zeros((ffn,), jnp.float32),
            "w2": nrm((ffn, hidden)), "b2": jnp.zeros((hidden,), jnp.float32),
            "ln2_g": jnp.ones((hidden,), jnp.float32),
            "ln2_b": jnp.zeros((hidden,), jnp.float32),
        }
        p["layers"].append(lp)
    return p


def aspect_classifier_forward(params, input_ids, attention_mask, *, heads, num_labels):
    B, S = input_ids.shape
    hidden = params["word_emb"].shape[1]
    d = hidden // heads

    # additive attention-mask bias, computed once per batch (hoisted out of kernels)
    mask_bias = ((1.0 - attention_mask.astype(jnp.float32)) * (-1e9)).reshape(B, 1, S)

    # --- embeddings (gathers are XLA glue; LayerNorm is a Pallas kernel) ---
    x = (jnp.take(params["word_emb"], input_ids, axis=0)
         + params["pos_emb"][:S][None, :, :]
         + params["type_emb"][0][None, None, :])                             # (B, S, H) bf16
    x2d = pallas_layernorm(x.reshape(B * S, hidden),
                           params["emb_ln_g"], params["emb_ln_b"])

    # head-group size: several heads batched per grid step, >=2 groups for megacore
    hg = heads // 2 if (heads % 2 == 0 and heads > 1) else heads

    # --- transformer encoder layers (frozen in the torch module) ---
    for lp in params["layers"]:
        # fused QKV projection: one GEMM instead of three
        qkv = pallas_matmul(x2d, lp["wqkv"], lp["bqkv"])                     # (B*S, 3H)
        # head-axis layout plumbing in the wrapper (XLA), not in-kernel
        qkv = qkv.reshape(B, S, 3, heads, d)
        q = jnp.transpose(qkv[:, :, 0], (0, 2, 1, 3))                        # (B, heads, S, d)
        k = jnp.transpose(qkv[:, :, 1], (0, 2, 1, 3))
        v = jnp.transpose(qkv[:, :, 2], (0, 2, 1, 3))
        ctx = pallas_attention(q, k, v, mask_bias, head_group=hg)            # (B, heads, S, d)
        ctx2d = jnp.transpose(ctx, (0, 2, 1, 3)).reshape(B * S, hidden)

        # wo projection fused with residual add + LayerNorm1
        x2d = pallas_matmul_res_ln(ctx2d, lp["wo"], lp["bo"], x2d,
                                   lp["ln1_g"], lp["ln1_b"])

        # FFN up-projection + GELU, then down-projection fused with residual + LN2
        h = pallas_matmul(x2d, lp["w1"], lp["b1"], activation="gelu")
        x2d = pallas_matmul_res_ln(h, lp["w2"], lp["b2"], x2d,
                                   lp["ln2_g"], lp["ln2_b"])

    # --- CLS token -> (identity) dropout -> classifier (lane-padded output) ---
    cls = x2d.reshape(B, S, hidden)[:, 0]                                     # (B, H) bf16
    logits_pad = pallas_matmul(cls, params["cls_w"], params["cls_b"],
                               out_dtype=jnp.float32)                         # (B, 128)
    return logits_pad[:, :num_labels]


# ----------------------------------- main ----------------------------------- #

if __name__ == "__main__":
    B, S = 2, 8
    VOCAB, MAX_POS = 64, 32
    HIDDEN, HEADS, LAYERS, FFN = 32, 4, 2, 64
    NUM_LABELS = 5

    key = jax.random.PRNGKey(0)
    k_param, k_ids = jax.random.split(key)

    params = init_params(k_param, vocab=VOCAB, max_pos=MAX_POS, hidden=HIDDEN,
                         heads=HEADS, layers=LAYERS, ffn=FFN, num_labels=NUM_LABELS)

    input_ids = jax.random.randint(k_ids, (B, S), 0, VOCAB, dtype=jnp.int32)
    attention_mask = jnp.array([[1, 1, 1, 1, 1, 1, 1, 1],
                                [1, 1, 1, 1, 1, 0, 0, 0]], dtype=jnp.int32)

    fwd = jax.jit(functools.partial(aspect_classifier_forward,
                                    heads=HEADS, num_labels=NUM_LABELS))
    logits = fwd(params, input_ids, attention_mask)
    jax.block_until_ready(logits)
    assert logits.shape == (B, NUM_LABELS) and logits.dtype == jnp.float32
    print("KERNEL_OK")
</pallas_src>

<mosaic_0001>
module attributes {stable_mosaic.version = 11 : i64} {
  func.func @layernorm_kernel(%arg0: i32, %arg1: memref<16x32xbf16, #tpu.memory_space<vmem>>, %arg2: memref<1x32xf32, #tpu.memory_space<vmem>>, %arg3: memref<1x32xf32, #tpu.memory_space<vmem>>, %arg4: memref<16x32xbf16, #tpu.memory_space<vmem>>) attributes {dimension_semantics = [#tpu.dimension_semantics<parallel>], iteration_bounds = array<i64: 1>, scalar_prefetch = 0 : i64, scratch_operands = 0 : i64, tpu.core_type = #tpu.core_type<tc>, window_params = [{transform_indices = @transform_0, window_bounds = array<i64: 16, 32>}, {pipeline_mode = #tpu.pipeline_mode<synchronous>, transform_indices = @transform_1, window_bounds = array<i64: 1, 32>}, {pipeline_mode = #tpu.pipeline_mode<synchronous>, transform_indices = @transform_2, window_bounds = array<i64: 1, 32>}, {transform_indices = @transform_3, window_bounds = array<i64: 16, 32>}]} {
    %c0 = arith.constant 0 : index
    %c0_0 = arith.constant 0 : index
    %0 = vector.load %arg1[%c0, %c0_0] : memref<16x32xbf16, #tpu.memory_space<vmem>>, vector<16x32xbf16>
    %1 = arith.extf %0 : vector<16x32xbf16> to vector<16x32xf32>
    %cst = arith.constant dense<0.000000e+00> : vector<16xf32>
    %2 = vector.multi_reduction <add>, %1, %cst [1] : vector<16x32xf32> to vector<16xf32>
    %3 = vector.shape_cast %2 : vector<16xf32> to vector<16x1xf32>
    %cst_1 = arith.constant 3.200000e+01 : f32
    %4 = vector.broadcast %cst_1 : f32 to vector<16x1xf32>
    %5 = arith.divf %3, %4 : vector<16x1xf32>
    %6 = vector.broadcast %5 : vector<16x1xf32> to vector<16x32xf32>
    %7 = arith.subf %1, %6 : vector<16x32xf32>
    %8 = arith.mulf %7, %7 : vector<16x32xf32>
    %cst_2 = arith.constant dense<0.000000e+00> : vector<16xf32>
    %9 = vector.multi_reduction <add>, %8, %cst_2 [1] : vector<16x32xf32> to vector<16xf32>
    %10 = vector.shape_cast %9 : vector<16xf32> to vector<16x1xf32>
    %cst_3 = arith.constant 3.200000e+01 : f32
    %11 = vector.broadcast %cst_3 : f32 to vector<16x1xf32>
    %12 = arith.divf %10, %11 : vector<16x1xf32>
    %13 = vector.broadcast %5 : vector<16x1xf32> to vector<16x32xf32>
    %14 = arith.subf %1, %13 : vector<16x32xf32>
    %cst_4 = arith.constant 9.99999996E-13 : f32
    %15 = vector.broadcast %cst_4 : f32 to vector<16x1xf32>
    %16 = arith.addf %12, %15 : vector<16x1xf32>
    %17 = math.rsqrt %16 : vector<16x1xf32>
    %18 = vector.broadcast %17 : vector<16x1xf32> to vector<16x32xf32>
    %19 = arith.mulf %14, %18 : vector<16x32xf32>
    %c0_5 = arith.constant 0 : index
    %c0_6 = arith.constant 0 : index
    %20 = vector.load %arg2[%c0_5, %c0_6] : memref<1x32xf32, #tpu.memory_space<vmem>>, vector<1x32xf32>
    %21 = vector.broadcast %20 : vector<1x32xf32> to vector<16x32xf32>
    %22 = arith.mulf %19, %21 : vector<16x32xf32>
    %c0_7 = arith.constant 0 : index
    %c0_8 = arith.constant 0 : index
    %23 = vector.load %arg3[%c0_7, %c0_8] : memref<1x32xf32, #tpu.memory_space<vmem>>, vector<1x32xf32>
    %24 = vector.broadcast %23 : vector<1x32xf32> to vector<16x32xf32>
    %25 = arith.addf %22, %24 : vector<16x32xf32>
    %26 = arith.truncf %25 : vector<16x32xf32> to vector<16x32xbf16>
    %c0_9 = arith.constant 0 : index
    %c0_10 = arith.constant 0 : index
    %27 = vector.load %arg4[%c0_9, %c0_10] : memref<16x32xbf16, #tpu.memory_space<vmem>>, vector<16x32xbf16>
    tpu.vector_store %arg4[%c0_9, %c0_10], %26 {strides = array<i32>} : memref<16x32xbf16, #tpu.memory_space<vmem>>, vector<16x32xbf16>,
    return
  }
  func.func @transform_0(%arg0: i32) -> (i32, i32) {
    %c0_i32 = arith.constant 0 : i32
    %c0_i32_0 = arith.constant 0 : i32
    return %arg0, %c0_i32 : i32, i32
  }
  func.func @transform_1(%arg0: i32) -> (i32, i32) {
    %c0_i32 = arith.constant 0 : i32
    %c0_i32_0 = arith.constant 0 : i32
    %c0_i32_1 = arith.constant 0 : i32
    return %c0_i32, %c0_i32_0 : i32, i32
  }
  func.func @transform_2(%arg0: i32) -> (i32, i32) {
    %c0_i32 = arith.constant 0 : i32
    %c0_i32_0 = arith.constant 0 : i32
    %c0_i32_1 = arith.constant 0 : i32
    return %c0_i32, %c0_i32_0 : i32, i32
  }
  func.func @transform_3(%arg0: i32) -> (i32, i32) {
    %c0_i32 = arith.constant 0 : i32
    %c0_i32_0 = arith.constant 0 : i32
    return %arg0, %c0_i32 : i32, i32
  }
}

module attributes {stable_mosaic.version = 11 : i64} {
  func.func @matmul_resident_kernel(%arg0: i32, %arg1: memref<16x32xbf16, #tpu.memory_space<vmem>>, %arg2: memref<32x96xbf16, #tpu.memory_space<vmem>>, %arg3: memref<1x96xf32, #tpu.memory_space<vmem>>, %arg4: memref<16x96xbf16, #tpu.memory_space<vmem>>) attributes {dimension_semantics = [#tpu.dimension_semantics<parallel>], iteration_bounds = array<i64: 1>, scalar_prefetch = 0 : i64, scratch_operands = 0 : i64, tpu.core_type = #tpu.core_type<tc>, window_params = [{transform_indices = @transform_0, window_bounds = array<i64: 16, 32>}, {pipeline_mode = #tpu.pipeline_mode<synchronous>, transform_indices = @transform_1, window_bounds = array<i64: 32, 96>}, {pipeline_mode = #tpu.pipeline_mode<synchronous>, transform_indices = @transform_2, window_bounds = array<i64: 1, 96>}, {transform_indices = @transform_3, window_bounds = array<i64: 16, 96>}]} {
    %c0 = arith.constant 0 : index
    %c0_0 = arith.constant 0 : index
    %0 = vector.load %arg1[%c0, %c0_0] : memref<16x32xbf16, #tpu.memory_space<vmem>>, vector<16x32xbf16>
    %c0_1 = arith.constant 0 : index
    %c0_2 = arith.constant 0 : index
    %1 = vector.load %arg2[%c0_1, %c0_2] : memref<32x96xbf16, #tpu.memory_space<vmem>>, vector<32x96xbf16>
    %cst = arith.constant dense<0.000000e+00> : vector<16x96xf32>
    %2 = tpu.matmul %0, %1, %cst {dimension_numbers = #tpu.dot_dimension_numbers<[1], [0], [0], [1], [0, 0, 1, 1], [], []>} : vector<16x32xbf16>, vector<32x96xbf16>, vector<16x96xf32> -> vector<16x96xf32>
    %c0_3 = arith.constant 0 : index
    %c0_4 = arith.constant 0 : index
    %3 = vector.load %arg3[%c0_3, %c0_4] : memref<1x96xf32, #tpu.memory_space<vmem>>, vector<1x96xf32>
    %4 = vector.broadcast %3 : vector<1x96xf32> to vector<16x96xf32>
    %5 = arith.addf %2, %4 : vector<16x96xf32>
    %6 = arith.truncf %5 : vector<16x96xf32> to vector<16x96xbf16>
    %c0_5 = arith.constant 0 : index
    %c0_6 = arith.constant 0 : index
    %7 = vector.load %arg4[%c0_5, %c0_6] : memref<16x96xbf16, #tpu.memory_space<vmem>>, vector<16x96xbf16>
    tpu.vector_store %arg4[%c0_5, %c0_6], %6 {strides = array<i32>} : memref<16x96xbf16, #tpu.memory_space<vmem>>, vector<16x96xbf16>,
    return
  }
  func.func @transform_0(%arg0: i32) -> (i32, i32) {
    %c0_i32 = arith.constant 0 : i32
    %c0_i32_0 = arith.constant 0 : i32
    return %arg0, %c0_i32 : i32, i32
  }
  func.func @transform_1(%arg0: i32) -> (i32, i32) {
    %c0_i32 = arith.constant 0 : i32
    %c0_i32_0 = arith.constant 0 : i32
    %c0_i32_1 = arith.constant 0 : i32
    return %c0_i32, %c0_i32_0 : i32, i32
  }
  func.func @transform_2(%arg0: i32) -> (i32, i32) {
    %c0_i32 = arith.constant 0 : i32
    %c0_i32_0 = arith.constant 0 : i32
    %c0_i32_1 = arith.constant 0 : i32
    return %c0_i32, %c0_i32_0 : i32, i32
  }
  func.func @transform_3(%arg0: i32) -> (i32, i32) {
    %c0_i32 = arith.constant 0 : i32
    %c0_i32_0 = arith.constant 0 : i32
    return %arg0, %c0_i32 : i32, i32
  }
}

module attributes {stable_mosaic.version = 11 : i64} {
  func.func @attention_kernel(%arg0: i32, %arg1: i32, %arg2: memref<1x2x8x8xbf16, #tpu.memory_space<vmem>>, %arg3: memref<1x2x8x8xbf16, #tpu.memory_space<vmem>>, %arg4: memref<1x2x8x8xbf16, #tpu.memory_space<vmem>>, %arg5: memref<1x1x8xf32, #tpu.memory_space<vmem>>, %arg6: memref<1x2x8x8xbf16, #tpu.memory_space<vmem>>) attributes {dimension_semantics = [#tpu.dimension_semantics<parallel>, #tpu.dimension_semantics<parallel>], iteration_bounds = array<i64: 2, 2>, scalar_prefetch = 0 : i64, scratch_operands = 0 : i64, tpu.core_type = #tpu.core_type<tc>, window_params = [{transform_indices = @transform_0, window_bounds = array<i64: 1, 2, 8, 8>}, {transform_indices = @transform_1, window_bounds = array<i64: 1, 2, 8, 8>}, {transform_indices = @transform_2, window_bounds = array<i64: 1, 2, 8, 8>}, {transform_indices = @transform_3, window_bounds = array<i64: 1, 1, 8>}, {transform_indices = @transform_4, window_bounds = array<i64: 1, 2, 8, 8>}]} {
    %c0 = arith.constant 0 : index
    %c0_0 = arith.constant 0 : index
    %c0_1 = arith.constant 0 : index
    %c0_2 = arith.constant 0 : index
    %0 = vector.load %arg2[%c0, %c0_0, %c0_1, %c0_2] : memref<1x2x8x8xbf16, #tpu.memory_space<vmem>>, vector<1x2x8x8xbf16>
    %1 = vector.shape_cast %0 : vector<1x2x8x8xbf16> to vector<2x8x8xbf16>
    %c0_3 = arith.constant 0 : index
    %c0_4 = arith.constant 0 : index
    %c0_5 = arith.constant 0 : index
    %c0_6 = arith.constant 0 : index
    %2 = vector.load %arg3[%c0_3, %c0_4, %c0_5, %c0_6] : memref<1x2x8x8xbf16, #tpu.memory_space<vmem>>, vector<1x2x8x8xbf16>
    %3 = vector.shape_cast %2 : vector<1x2x8x8xbf16> to vector<2x8x8xbf16>
    %c0_7 = arith.constant 0 : index
    %c0_8 = arith.constant 0 : index
    %c0_9 = arith.constant 0 : index
    %c0_10 = arith.constant 0 : index
    %4 = vector.load %arg4[%c0_7, %c0_8, %c0_9, %c0_10] : memref<1x2x8x8xbf16, #tpu.memory_space<vmem>>, vector<1x2x8x8xbf16>
    %5 = vector.shape_cast %4 : vector<1x2x8x8xbf16> to vector<2x8x8xbf16>
    %c0_11 = arith.constant 0 : index
    %c0_12 = arith.constant 0 : index
    %c0_13 = arith.constant 0 : index
    %6 = vector.load %arg5[%c0_11, %c0_12, %c0_13] : memref<1x1x8xf32, #tpu.memory_space<vmem>>, vector<1x1x8xf32>
    "tpu.trace_start"() <{level = 10 : i32, message = "hqd,hkd->hqk"}> : () -> ()
    %cst = arith.constant dense<0.000000e+00> : vector<2x8x8xf32>
    %7 = tpu.matmul %1, %3, %cst {dimension_numbers = #tpu.dot_dimension_numbers<[2], [2], [1], [1], [0, 0, 0, 1, 1, 1], [0], [0]>} : vector<2x8x8xbf16>, vector<2x8x8xbf16>, vector<2x8x8xf32> -> vector<2x8x8xf32>
    "tpu.trace_stop"() : () -> ()
    %8 = vector.broadcast %6 : vector<1x1x8xf32> to vector<2x8x8xf32>
    %9 = arith.addf %7, %8 : vector<2x8x8xf32>
    %cst_14 = arith.constant dense<0xFF800000> : vector<2x8xf32>
    %10 = vector.multi_reduction <maximumf>, %9, %cst_14 [2] : vector<2x8x8xf32> to vector<2x8xf32>
    %11 = vector.shape_cast %10 : vector<2x8xf32> to vector<2x8x1xf32>
    %12 = vector.broadcast %11 : vector<2x8x1xf32> to vector<2x8x8xf32>
    %13 = arith.subf %9, %12 : vector<2x8x8xf32>
    %14 = math.exp %13 : vector<2x8x8xf32>
    %cst_15 = arith.constant dense<0.000000e+00> : vector<2x8xf32>
    %15 = vector.multi_reduction <add>, %14, %cst_15 [2] : vector<2x8x8xf32> to vector<2x8xf32>
    %16 = vector.shape_cast %15 : vector<2x8xf32> to vector<2x8x1xf32>
    %17 = vector.broadcast %16 : vector<2x8x1xf32> to vector<2x8x8xf32>
    %18 = arith.divf %14, %17 : vector<2x8x8xf32>
    %19 = arith.truncf %18 : vector<2x8x8xf32> to vector<2x8x8xbf16>
    "tpu.trace_start"() <{level = 10 : i32, message = "hqk,hkd->hqd"}> : () -> ()
    %cst_16 = arith.constant dense<0.000000e+00> : vector<2x8x8xf32>
    %20 = tpu.matmul %19, %5, %cst_16 {dimension_numbers = #tpu.dot_dimension_numbers<[2], [1], [1], [2], [0, 0, 0, 1, 1, 2], [0], [0]>} : vector<2x8x8xbf16>, vector<2x8x8xbf16>, vector<2x8x8xf32> -> vector<2x8x8xf32>
    "tpu.trace_stop"() : () -> ()
    %21 = arith.truncf %20 : vector<2x8x8xf32> to vector<2x8x8xbf16>
    %c0_17 = arith.constant 0 : index
    %c0_18 = arith.constant 0 : index
    %c0_19 = arith.constant 0 : index
    %c0_20 = arith.constant 0 : index
    %22 = vector.load %arg6[%c0_17, %c0_18, %c0_19, %c0_20] : memref<1x2x8x8xbf16, #tpu.memory_space<vmem>>, vector<1x2x8x8xbf16>
    %23 = vector.shape_cast %22 : vector<1x2x8x8xbf16> to vector<2x8x8xbf16>
    %24 = vector.shape_cast %21 : vector<2x8x8xbf16> to vector<1x2x8x8xbf16>
    tpu.vector_store %arg6[%c0_17, %c0_18, %c0_19, %c0_20], %24 {strides = array<i32>} : memref<1x2x8x8xbf16, #tpu.memory_space<vmem>>, vector<1x2x8x8xbf16>,
    return
  }
  func.func @transform_0(%arg0: i32, %arg1: i32) -> (i32, i32, i32, i32) {
    %c0_i32 = arith.constant 0 : i32
    %c0_i32_0 = arith.constant 0 : i32
    %c0_i32_1 = arith.constant 0 : i32
    return %arg0, %arg1, %c0_i32, %c0_i32_0 : i32, i32, i32, i32
  }
  func.func @transform_1(%arg0: i32, %arg1: i32) -> (i32, i32, i32, i32) {
    %c0_i32 = arith.constant 0 : i32
    %c0_i32_0 = arith.constant 0 : i32
    %c0_i32_1 = arith.constant 0 : i32
    return %arg0, %arg1, %c0_i32, %c0_i32_0 : i32, i32, i32, i32
  }
  func.func @transform_2(%arg0: i32, %arg1: i32) -> (i32, i32, i32, i32) {
    %c0_i32 = arith.constant 0 : i32
    %c0_i32_0 = arith.constant 0 : i32
    %c0_i32_1 = arith.constant 0 : i32
    return %arg0, %arg1, %c0_i32, %c0_i32_0 : i32, i32, i32, i32
  }
  func.func @transform_3(%arg0: i32, %arg1: i32) -> (i32, i32, i32) {
    %c0_i32 = arith.constant 0 : i32
    %c0_i32_0 = arith.constant 0 : i32
    %c0_i32_1 = arith.constant 0 : i32
    return %arg0, %c0_i32, %c0_i32_0 : i32, i32, i32
  }
  func.func @transform_4(%arg0: i32, %arg1: i32) -> (i32, i32, i32, i32) {
    %c0_i32 = arith.constant 0 : i32
    %c0_i32_0 = arith.constant 0 : i32
    %c0_i32_1 = arith.constant 0 : i32
    return %arg0, %arg1, %c0_i32, %c0_i32_0 : i32, i32, i32, i32
  }
}

module attributes {stable_mosaic.version = 11 : i64} {
  func.func @matmul_res_ln_kernel(%arg0: i32, %arg1: i32, %arg2: memref<16x32xbf16, #tpu.memory_space<vmem>>, %arg3: memref<32x32xbf16, #tpu.memory_space<vmem>>, %arg4: memref<1x32xf32, #tpu.memory_space<vmem>>, %arg5: memref<16x32xbf16, #tpu.memory_space<vmem>>, %arg6: memref<1x32xf32, #tpu.memory_space<vmem>>, %arg7: memref<1x32xf32, #tpu.memory_space<vmem>>, %arg8: memref<16x32xbf16, #tpu.memory_space<vmem>>, %arg9: memref<16x32xf32, #tpu.memory_space<vmem>>) attributes {dimension_semantics = [#tpu.dimension_semantics<parallel>, #tpu.dimension_semantics<arbitrary>], iteration_bounds = array<i64: 1, 1>, scalar_prefetch = 0 : i64, scratch_operands = 1 : i64, tpu.core_type = #tpu.core_type<tc>, window_params = [{transform_indices = @transform_0, window_bounds = array<i64: 16, 32>}, {transform_indices = @transform_1, window_bounds = array<i64: 32, 32>}, {pipeline_mode = #tpu.pipeline_mode<synchronous>, transform_indices = @transform_2, window_bounds = array<i64: 1, 32>}, {transform_indices = @transform_3, window_bounds = array<i64: 16, 32>}, {pipeline_mode = #tpu.pipeline_mode<synchronous>, transform_indices = @transform_4, window_bounds = array<i64: 1, 32>}, {pipeline_mode = #tpu.pipeline_mode<synchronous>, transform_indices = @transform_5, window_bounds = array<i64: 1, 32>}, {transform_indices = @transform_6, window_bounds = array<i64: 16, 32>}]} {
    %c0_i32 = arith.constant 0 : i32
    %0 = arith.cmpi eq, %arg1, %c0_i32 : i32
    %1 = arith.extui %0 : i1 to i32
    %c0_i32_0 = arith.constant 0 : i32
    %2 = arith.cmpi ne, %1, %c0_i32_0 : i32
    scf.if %2 {
      %cst_10 = arith.constant 0.000000e+00 : f32
      %12 = vector.broadcast %cst_10 : f32 to vector<16x32xf32>
      %c0_11 = arith.constant 0 : index
      %c0_12 = arith.constant 0 : index
      %13 = vector.load %arg9[%c0_11, %c0_12] : memref<16x32xf32, #tpu.memory_space<vmem>>, vector<16x32xf32>
      tpu.vector_store %arg9[%c0_11, %c0_12], %12 {strides = array<i32>} : memref<16x32xf32, #tpu.memory_space<vmem>>, vector<16x32xf32>,
    } else {
    }
    %c0 = arith.constant 0 : index
    %c0_1 = arith.constant 0 : index
    %3 = vector.load %arg9[%c0, %c0_1] : memref<16x32xf32, #tpu.memory_space<vmem>>, vector<16x32xf32>
    %c0_2 = arith.constant 0 : index
    %c0_3 = arith.constant 0 : index
    %4 = vector.load %arg2[%c0_2, %c0_3] : memref<16x32xbf16, #tpu.memory_space<vmem>>, vector<16x32xbf16>
    %c0_4 = arith.constant 0 : index
    %c0_5 = arith.constant 0 : index
    %5 = vector.load %arg3[%c0_4, %c0_5] : memref<32x32xbf16, #tpu.memory_space<vmem>>, vector<32x32xbf16>
    %cst = arith.constant dense<0.000000e+00> : vector<16x32xf32>
    %6 = tpu.matmul %4, %5, %cst {dimension_numbers = #tpu.dot_dimension_numbers<[1], [0], [0], [1], [0, 0, 1, 1], [], []>} : vector<16x32xbf16>, vector<32x32xbf16>, vector<16x32xf32> -> vector<16x32xf32>
    %7 = arith.addf %3, %6 : vector<16x32xf32>
    %c0_6 = arith.constant 0 : index
    %c0_7 = arith.constant 0 : index
    %8 = vector.load %arg9[%c0_6, %c0_7] : memref<16x32xf32, #tpu.memory_space<vmem>>, vector<16x32xf32>
    tpu.vector_store %arg9[%c0_6, %c0_7], %7 {strides = array<i32>} : memref<16x32xf32, #tpu.memory_space<vmem>>, vector<16x32xf32>,
    %c0_i32_8 = arith.constant 0 : i32
    %9 = arith.cmpi eq, %arg1, %c0_i32_8 : i32
    %10 = arith.extui %9 : i1 to i32
    %c0_i32_9 = arith.constant 0 : i32
    %11 = arith.cmpi ne, %10, %c0_i32_9 : i32
    scf.if %11 {
      %c0_10 = arith.constant 0 : index
      %c0_11 = arith.constant 0 : index
      %12 = vector.load %arg9[%c0_10, %c0_11] : memref<16x32xf32, #tpu.memory_space<vmem>>, vector<16x32xf32>
      %c0_12 = arith.constant 0 : index
      %c0_13 = arith.constant 0 : index
      %13 = vector.load %arg4[%c0_12, %c0_13] : memref<1x32xf32, #tpu.memory_space<vmem>>, vector<1x32xf32>
      %14 = vector.broadcast %13 : vector<1x32xf32> to vector<16x32xf32>
      %15 = arith.addf %12, %14 : vector<16x32xf32>
      %c0_14 = arith.constant 0 : index
      %c0_15 = arith.constant 0 : index
      %16 = vector.load %arg5[%c0_14, %c0_15] : memref<16x32xbf16, #tpu.memory_space<vmem>>, vector<16x32xbf16>
      %17 = arith.extf %16 : vector<16x32xbf16> to vector<16x32xf32>
      %18 = arith.addf %15, %17 : vector<16x32xf32>
      %cst_16 = arith.constant dense<0.000000e+00> : vector<16xf32>
      %19 = vector.multi_reduction <add>, %18, %cst_16 [1] : vector<16x32xf32> to vector<16xf32>
      %20 = vector.shape_cast %19 : vector<16xf32> to vector<16x1xf32>
      %cst_17 = arith.constant 3.200000e+01 : f32
      %21 = vector.broadcast %cst_17 : f32 to vector<16x1xf32>
      %22 = arith.divf %20, %21 : vector<16x1xf32>
      %23 = vector.broadcast %22 : vector<16x1xf32> to vector<16x32xf32>
      %24 = arith.subf %18, %23 : vector<16x32xf32>
      %25 = arith.mulf %24, %24 : vector<16x32xf32>
      %cst_18 = arith.constant dense<0.000000e+00> : vector<16xf32>
      %26 = vector.multi_reduction <add>, %25, %cst_18 [1] : vector<16x32xf32> to vector<16xf32>
      %27 = vector.shape_cast %26 : vector<16xf32> to vector<16x1xf32>
      %cst_19 = arith.constant 3.200000e+01 : f32
      %28 = vector.broadcast %cst_19 : f32 to vector<16x1xf32>
      %29 = arith.divf %27, %28 : vector<16x1xf32>
      %30 = vector.broadcast %22 : vector<16x1xf32> to vector<16x32xf32>
      %31 = arith.subf %18, %30 : vector<16x32xf32>
      %cst_20 = arith.constant 9.99999996E-13 : f32
      %32 = vector.broadcast %cst_20 : f32 to vector<16x1xf32>
      %33 = arith.addf %29, %32 : vector<16x1xf32>
      %34 = math.rsqrt %33 : vector<16x1xf32>
      %35 = vector.broadcast %34 : vector<16x1xf32> to vector<16x32xf32>
      %36 = arith.mulf %31, %35 : vector<16x32xf32>
      %c0_21 = arith.constant 0 : index
      %c0_22 = arith.constant 0 : index
      %37 = vector.load %arg6[%c0_21, %c0_22] : memref<1x32xf32, #tpu.memory_space<vmem>>, vector<1x32xf32>
      %38 = vector.broadcast %37 : vector<1x32xf32> to vector<16x32xf32>
      %39 = arith.mulf %36, %38 : vector<16x32xf32>
      %c0_23 = arith.constant 0 : index
      %c0_24 = arith.constant 0 : index
      %40 = vector.load %arg7[%c0_23, %c0_24] : memref<1x32xf32, #tpu.memory_space<vmem>>, vector<1x32xf32>
      %41 = vector.broadcast %40 : vector<1x32xf32> to vector<16x32xf32>
      %42 = arith.addf %39, %41 : vector<16x32xf32>
      %43 = arith.truncf %42 : vector<16x32xf32> to vector<16x32xbf16>
      %c0_25 = arith.constant 0 : index
      %c0_26 = arith.constant 0 : index
      %44 = vector.load %arg8[%c0_25, %c0_26] : memref<16x32xbf16, #tpu.memory_space<vmem>>, vector<16x32xbf16>
      tpu.vector_store %arg8[%c0_25, %c0_26], %43 {strides = array<i32>} : memref<16x32xbf16, #tpu.memory_space<vmem>>, vector<16x32xbf16>,
    } else {
    }
    return
  }
  func.func @transform_0(%arg0: i32, %arg1: i32) -> (i32, i32) {
    %c0_i32 = arith.constant 0 : i32
    return %arg0, %arg1 : i32, i32
  }
  func.func @transform_1(%arg0: i32, %arg1: i32) -> (i32, i32) {
    %c0_i32 = arith.constant 0 : i32
    %c0_i32_0 = arith.constant 0 : i32
    return %arg1, %c0_i32 : i32, i32
  }
  func.func @transform_2(%arg0: i32, %arg1: i32) -> (i32, i32) {
    %c0_i32 = arith.constant 0 : i32
    %c0_i32_0 = arith.constant 0 : i32
    %c0_i32_1 = arith.constant 0 : i32
    return %c0_i32, %c0_i32_0 : i32, i32
  }
  func.func @transform_3(%arg0: i32, %arg1: i32) -> (i32, i32) {
    %c0_i32 = arith.constant 0 : i32
    %c0_i32_0 = arith.constant 0 : i32
    return %arg0, %c0_i32 : i32, i32
  }
  func.func @transform_4(%arg0: i32, %arg1: i32) -> (i32, i32) {
    %c0_i32 = arith.constant 0 : i32
    %c0_i32_0 = arith.constant 0 : i32
    %c0_i32_1 = arith.constant 0 : i32
    return %c0_i32, %c0_i32_0 : i32, i32
  }
  func.func @transform_5(%arg0: i32, %arg1: i32) -> (i32, i32) {
    %c0_i32 = arith.constant 0 : i32
    %c0_i32_0 = arith.constant 0 : i32
    %c0_i32_1 = arith.constant 0 : i32
    return %c0_i32, %c0_i32_0 : i32, i32
  }
  func.func @transform_6(%arg0: i32, %arg1: i32) -> (i32, i32) {
    %c0_i32 = arith.constant 0 : i32
    %c0_i32_0 = arith.constant 0 : i32
    return %arg0, %c0_i32 : i32, i32
  }
}

module attributes {stable_mosaic.version = 11 : i64} {
  func.func @matmul_res_ln_kernel(%arg0: i32, %arg1: i32, %arg2: memref<16x64xbf16, #tpu.memory_space<vmem>>, %arg3: memref<64x32xbf16, #tpu.memory_space<vmem>>, %arg4: memref<1x32xf32, #tpu.memory_space<vmem>>, %arg5: memref<16x32xbf16, #tpu.memory_space<vmem>>, %arg6: memref<1x32xf32, #tpu.memory_space<vmem>>, %arg7: memref<1x32xf32, #tpu.memory_space<vmem>>, %arg8: memref<16x32xbf16, #tpu.memory_space<vmem>>, %arg9: memref<16x32xf32, #tpu.memory_space<vmem>>) attributes {dimension_semantics = [#tpu.dimension_semantics<parallel>, #tpu.dimension_semantics<arbitrary>], iteration_bounds = array<i64: 1, 1>, scalar_prefetch = 0 : i64, scratch_operands = 1 : i64, tpu.core_type = #tpu.core_type<tc>, window_params = [{transform_indices = @transform_0, window_bounds = array<i64: 16, 64>}, {transform_indices = @transform_1, window_bounds = array<i64: 64, 32>}, {pipeline_mode = #tpu.pipeline_mode<synchronous>, transform_indices = @transform_2, window_bounds = array<i64: 1, 32>}, {transform_indices = @transform_3, window_bounds = array<i64: 16, 32>}, {pipeline_mode = #tpu.pipeline_mode<synchronous>, transform_indices = @transform_4, window_bounds = array<i64: 1, 32>}, {pipeline_mode = #tpu.pipeline_mode<synchronous>, transform_indices = @transform_5, window_bounds = array<i64: 1, 32>}, {transform_indices = @transform_6, window_bounds = array<i64: 16, 32>}]} {
    %c0_i32 = arith.constant 0 : i32
    %0 = arith.cmpi eq, %arg1, %c0_i32 : i32
    %1 = arith.extui %0 : i1 to i32
    %c0_i32_0 = arith.constant 0 : i32
    %2 = arith.cmpi ne, %1, %c0_i32_0 : i32
    scf.if %2 {
      %cst_10 = arith.constant 0.000000e+00 : f32
      %12 = vector.broadcast %cst_10 : f32 to vector<16x32xf32>
      %c0_11 = arith.constant 0 : index
      %c0_12 = arith.constant 0 : index
      %13 = vector.load %arg9[%c0_11, %c0_12] : memref<16x32xf32, #tpu.memory_space<vmem>>, vector<16x32xf32>
      tpu.vector_store %arg9[%c0_11, %c0_12], %12 {strides = array<i32>} : memref<16x32xf32, #tpu.memory_space<vmem>>, vector<16x32xf32>,
    } else {
    }
    %c0 = arith.constant 0 : index
    %c0_1 = arith.constant 0 : index
    %3 = vector.load %arg9[%c0, %c0_1] : memref<16x32xf32, #tpu.memory_space<vmem>>, vector<16x32xf32>
    %c0_2 = arith.constant 0 : index
    %c0_3 = arith.constant 0 : index
    %4 = vector.load %arg2[%c0_2, %c0_3] : memref<16x64xbf16, #tpu.memory_space<vmem>>, vector<16x64xbf16>
    %c0_4 = arith.constant 0 : index
    %c0_5 = arith.constant 0 : index
    %5 = vector.load %arg3[%c0_4, %c0_5] : memref<64x32xbf16, #tpu.memory_space<vmem>>, vector<64x32xbf16>
    %cst = arith.constant dense<0.000000e+00> : vector<16x32xf32>
    %6 = tpu.matmul %4, %5, %cst {dimension_numbers = #tpu.dot_dimension_numbers<[1], [0], [0], [1], [0, 0, 1, 1], [], []>} : vector<16x64xbf16>, vector<64x32xbf16>, vector<16x32xf32> -> vector<16x32xf32>
    %7 = arith.addf %3, %6 : vector<16x32xf32>
    %c0_6 = arith.constant 0 : index
    %c0_7 = arith.constant 0 : index
    %8 = vector.load %arg9[%c0_6, %c0_7] : memref<16x32xf32, #tpu.memory_space<vmem>>, vector<16x32xf32>
    tpu.vector_store %arg9[%c0_6, %c0_7], %7 {strides = array<i32>} : memref<16x32xf32, #tpu.memory_space<vmem>>, vector<16x32xf32>,
    %c0_i32_8 = arith.constant 0 : i32
    %9 = arith.cmpi eq, %arg1, %c0_i32_8 : i32
    %10 = arith.extui %9 : i1 to i32
    %c0_i32_9 = arith.constant 0 : i32
    %11 = arith.cmpi ne, %10, %c0_i32_9 : i32
    scf.if %11 {
      %c0_10 = arith.constant 0 : index
      %c0_11 = arith.constant 0 : index
      %12 = vector.load %arg9[%c0_10, %c0_11] : memref<16x32xf32, #tpu.memory_space<vmem>>, vector<16x32xf32>
      %c0_12 = arith.constant 0 : index
      %c0_13 = arith.constant 0 : index
      %13 = vector.load %arg4[%c0_12, %c0_13] : memref<1x32xf32, #tpu.memory_space<vmem>>, vector<1x32xf32>
      %14 = vector.broadcast %13 : vector<1x32xf32> to vector<16x32xf32>
      %15 = arith.addf %12, %14 : vector<16x32xf32>
      %c0_14 = arith.constant 0 : index
      %c0_15 = arith.constant 0 : index
      %16 = vector.load %arg5[%c0_14, %c0_15] : memref<16x32xbf16, #tpu.memory_space<vmem>>, vector<16x32xbf16>
      %17 = arith.extf %16 : vector<16x32xbf16> to vector<16x32xf32>
      %18 = arith.addf %15, %17 : vector<16x32xf32>
      %cst_16 = arith.constant dense<0.000000e+00> : vector<16xf32>
      %19 = vector.multi_reduction <add>, %18, %cst_16 [1] : vector<16x32xf32> to vector<16xf32>
      %20 = vector.shape_cast %19 : vector<16xf32> to vector<16x1xf32>
      %cst_17 = arith.constant 3.200000e+01 : f32
      %21 = vector.broadcast %cst_17 : f32 to vector<16x1xf32>
      %22 = arith.divf %20, %21 : vector<16x1xf32>
      %23 = vector.broadcast %22 : vector<16x1xf32> to vector<16x32xf32>
      %24 = arith.subf %18, %23 : vector<16x32xf32>
      %25 = arith.mulf %24, %24 : vector<16x32xf32>
      %cst_18 = arith.constant dense<0.000000e+00> : vector<16xf32>
      %26 = vector.multi_reduction <add>, %25, %cst_18 [1] : vector<16x32xf32> to vector<16xf32>
      %27 = vector.shape_cast %26 : vector<16xf32> to vector<16x1xf32>
      %cst_19 = arith.constant 3.200000e+01 : f32
      %28 = vector.broadcast %cst_19 : f32 to vector<16x1xf32>
      %29 = arith.divf %27, %28 : vector<16x1xf32>
      %30 = vector.broadcast %22 : vector<16x1xf32> to vector<16x32xf32>
      %31 = arith.subf %18, %30 : vector<16x32xf32>
      %cst_20 = arith.constant 9.99999996E-13 : f32
      %32 = vector.broadcast %cst_20 : f32 to vector<16x1xf32>
      %33 = arith.addf %29, %32 : vector<16x1xf32>
      %34 = math.rsqrt %33 : vector<16x1xf32>
      %35 = vector.broadcast %34 : vector<16x1xf32> to vector<16x32xf32>
      %36 = arith.mulf %31, %35 : vector<16x32xf32>
      %c0_21 = arith.constant 0 : index
      %c0_22 = arith.constant 0 : index
      %37 = vector.load %arg6[%c0_21, %c0_22] : memref<1x32xf32, #tpu.memory_space<vmem>>, vector<1x32xf32>
      %38 = vector.broadcast %37 : vector<1x32xf32> to vector<16x32xf32>
      %39 = arith.mulf %36, %38 : vector<16x32xf32>
      %c0_23 = arith.constant 0 : index
      %c0_24 = arith.constant 0 : index
      %40 = vector.load %arg7[%c0_23, %c0_24] : memref<1x32xf32, #tpu.memory_space<vmem>>, vector<1x32xf32>
      %41 = vector.broadcast %40 : vector<1x32xf32> to vector<16x32xf32>
      %42 = arith.addf %39, %41 : vector<16x32xf32>
      %43 = arith.truncf %42 : vector<16x32xf32> to vector<16x32xbf16>
      %c0_25 = arith.constant 0 : index
      %c0_26 = arith.constant 0 : index
      %44 = vector.load %arg8[%c0_25, %c0_26] : memref<16x32xbf16, #tpu.memory_space<vmem>>, vector<16x32xbf16>
      tpu.vector_store %arg8[%c0_25, %c0_26], %43 {strides = array<i32>} : memref<16x32xbf16, #tpu.memory_space<vmem>>, vector<16x32xbf16>,
    } else {
    }
    return
  }
  func.func @transform_0(%arg0: i32, %arg1: i32) -> (i32, i32) {
    %c0_i32 = arith.constant 0 : i32
    return %arg0, %arg1 : i32, i32
  }
  func.func @transform_1(%arg0: i32, %arg1: i32) -> (i32, i32) {
    %c0_i32 = arith.constant 0 : i32
    %c0_i32_0 = arith.constant 0 : i32
    return %arg1, %c0_i32 : i32, i32
  }
  func.func @transform_2(%arg0: i32, %arg1: i32) -> (i32, i32) {
    %c0_i32 = arith.constant 0 : i32
    %c0_i32_0 = arith.constant 0 : i32
    %c0_i32_1 = arith.constant 0 : i32
    return %c0_i32, %c0_i32_0 : i32, i32
  }
  func.func @transform_3(%arg0: i32, %arg1: i32) -> (i32, i32) {
    %c0_i32 = arith.constant 0 : i32
    %c0_i32_0 = arith.constant 0 : i32
    return %arg0, %c0_i32 : i32, i32
  }
  func.func @transform_4(%arg0: i32, %arg1: i32) -> (i32, i32) {
    %c0_i32 = arith.constant 0 : i32
    %c0_i32_0 = arith.constant 0 : i32
    %c0_i32_1 = arith.constant 0 : i32
    return %c0_i32, %c0_i32_0 : i32, i32
  }
  func.func @transform_5(%arg0: i32, %arg1: i32) -> (i32, i32) {
    %c0_i32 = arith.constant 0 : i32
    %c0_i32_0 = arith.constant 0 : i32
    %c0_i32_1 = arith.constant 0 : i32
    return %c0_i32, %c0_i32_0 : i32, i32
  }
  func.func @transform_6(%arg0: i32, %arg1: i32) -> (i32, i32) {
    %c0_i32 = arith.constant 0 : i32
    %c0_i32_0 = arith.constant 0 : i32
    return %arg0, %c0_i32 : i32, i32
  }
}

module attributes {stable_mosaic.version = 11 : i64} {
  func.func @matmul_resident_kernel(%arg0: i32, %arg1: memref<16x32xbf16, #tpu.memory_space<vmem>>, %arg2: memref<32x64xbf16, #tpu.memory_space<vmem>>, %arg3: memref<1x64xf32, #tpu.memory_space<vmem>>, %arg4: memref<16x64xbf16, #tpu.memory_space<vmem>>) attributes {dimension_semantics = [#tpu.dimension_semantics<parallel>], iteration_bounds = array<i64: 1>, scalar_prefetch = 0 : i64, scratch_operands = 0 : i64, tpu.core_type = #tpu.core_type<tc>, window_params = [{transform_indices = @transform_0, window_bounds = array<i64: 16, 32>}, {pipeline_mode = #tpu.pipeline_mode<synchronous>, transform_indices = @transform_1, window_bounds = array<i64: 32, 64>}, {pipeline_mode = #tpu.pipeline_mode<synchronous>, transform_indices = @transform_2, window_bounds = array<i64: 1, 64>}, {transform_indices = @transform_3, window_bounds = array<i64: 16, 64>}]} {
    %c0 = arith.constant 0 : index
    %c0_0 = arith.constant 0 : index
    %0 = vector.load %arg1[%c0, %c0_0] : memref<16x32xbf16, #tpu.memory_space<vmem>>, vector<16x32xbf16>
    %c0_1 = arith.constant 0 : index
    %c0_2 = arith.constant 0 : index
    %1 = vector.load %arg2[%c0_1, %c0_2] : memref<32x64xbf16, #tpu.memory_space<vmem>>, vector<32x64xbf16>
    %cst = arith.constant dense<0.000000e+00> : vector<16x64xf32>
    %2 = tpu.matmul %0, %1, %cst {dimension_numbers = #tpu.dot_dimension_numbers<[1], [0], [0], [1], [0, 0, 1, 1], [], []>} : vector<16x32xbf16>, vector<32x64xbf16>, vector<16x64xf32> -> vector<16x64xf32>
    %c0_3 = arith.constant 0 : index
    %c0_4 = arith.constant 0 : index
    %3 = vector.load %arg3[%c0_3, %c0_4] : memref<1x64xf32, #tpu.memory_space<vmem>>, vector<1x64xf32>
    %4 = vector.broadcast %3 : vector<1x64xf32> to vector<16x64xf32>
    %5 = arith.addf %2, %4 : vector<16x64xf32>
    %6 = arith.mulf %5, %5 : vector<16x64xf32>
    %7 = arith.mulf %5, %6 : vector<16x64xf32>
    %cst_5 = arith.constant 4.471500e-02 : f32
    %8 = vector.broadcast %cst_5 : f32 to vector<16x64xf32>
    %9 = arith.mulf %8, %7 : vector<16x64xf32>
    %10 = arith.addf %5, %9 : vector<16x64xf32>
    %cst_6 = arith.constant 0.797884583 : f32
    %11 = vector.broadcast %cst_6 : f32 to vector<16x64xf32>
    %12 = arith.mulf %11, %10 : vector<16x64xf32>
    %13 = math.tanh %12 : vector<16x64xf32>
    %cst_7 = arith.constant 1.000000e+00 : f32
    %14 = vector.broadcast %cst_7 : f32 to vector<16x64xf32>
    %15 = arith.addf %14, %13 : vector<16x64xf32>
    %cst_8 = arith.constant 5.000000e-01 : f32
    %16 = vector.broadcast %cst_8 : f32 to vector<16x64xf32>
    %17 = arith.mulf %16, %15 : vector<16x64xf32>
    %18 = arith.mulf %5, %17 : vector<16x64xf32>
    %19 = arith.truncf %18 : vector<16x64xf32> to vector<16x64xbf16>
    %c0_9 = arith.constant 0 : index
    %c0_10 = arith.constant 0 : index
    %20 = vector.load %arg4[%c0_9, %c0_10] : memref<16x64xbf16, #tpu.memory_space<vmem>>, vector<16x64xbf16>
    tpu.vector_store %arg4[%c0_9, %c0_10], %19 {strides = array<i32>} : memref<16x64xbf16, #tpu.memory_space<vmem>>, vector<16x64xbf16>,
    return
  }
  func.func @transform_0(%arg0: i32) -> (i32, i32) {
    %c0_i32 = arith.constant 0 : i32
    %c0_i32_0 = arith.constant 0 : i32
    return %arg0, %c0_i32 : i32, i32
  }
  func.func @transform_1(%arg0: i32) -> (i32, i32) {
    %c0_i32 = arith.constant 0 : i32
    %c0_i32_0 = arith.constant 0 : i32
    %c0_i32_1 = arith.constant 0 : i32
    return %c0_i32, %c0_i32_0 : i32, i32
  }
  func.func @transform_2(%arg0: i32) -> (i32, i32) {
    %c0_i32 = arith.constant 0 : i32
    %c0_i32_0 = arith.constant 0 : i32
    %c0_i32_1 = arith.constant 0 : i32
    return %c0_i32, %c0_i32_0 : i32, i32
  }
  func.func @transform_3(%arg0: i32) -> (i32, i32) {
    %c0_i32 = arith.constant 0 : i32
    %c0_i32_0 = arith.constant 0 : i32
    return %arg0, %c0_i32 : i32, i32
  }
}

module attributes {stable_mosaic.version = 11 : i64} {
  func.func @matmul_resident_kernel(%arg0: i32, %arg1: memref<8x32xbf16, #tpu.memory_space<vmem>>, %arg2: memref<32x128xbf16, #tpu.memory_space<vmem>>, %arg3: memref<1x128xf32, #tpu.memory_space<vmem>>, %arg4: memref<8x128xf32, #tpu.memory_space<vmem>>) attributes {dimension_semantics = [#tpu.dimension_semantics<parallel>], iteration_bounds = array<i64: 1>, scalar_prefetch = 0 : i64, scratch_operands = 0 : i64, tpu.core_type = #tpu.core_type<tc>, window_params = [{transform_indices = @transform_0, window_bounds = array<i64: 8, 32>}, {pipeline_mode = #tpu.pipeline_mode<synchronous>, transform_indices = @transform_1, window_bounds = array<i64: 32, 128>}, {pipeline_mode = #tpu.pipeline_mode<synchronous>, transform_indices = @transform_2, window_bounds = array<i64: 1, 128>}, {transform_indices = @transform_3, window_bounds = array<i64: 8, 128>}]} {
    %c0 = arith.constant 0 : index
    %c0_0 = arith.constant 0 : index
    %0 = vector.load %arg1[%c0, %c0_0] : memref<8x32xbf16, #tpu.memory_space<vmem>>, vector<8x32xbf16>
    %c0_1 = arith.constant 0 : index
    %c0_2 = arith.constant 0 : index
    %1 = vector.load %arg2[%c0_1, %c0_2] : memref<32x128xbf16, #tpu.memory_space<vmem>>, vector<32x128xbf16>
    %cst = arith.constant dense<0.000000e+00> : vector<8x128xf32>
    %2 = tpu.matmul %0, %1, %cst {dimension_numbers = #tpu.dot_dimension_numbers<[1], [0], [0], [1], [0, 0, 1, 1], [], []>} : vector<8x32xbf16>, vector<32x128xbf16>, vector<8x128xf32> -> vector<8x128xf32>
    %c0_3 = arith.constant 0 : index
    %c0_4 = arith.constant 0 : index
    %3 = vector.load %arg3[%c0_3, %c0_4] : memref<1x128xf32, #tpu.memory_space<vmem>>, vector<1x128xf32>
    %4 = vector.broadcast %3 : vector<1x128xf32> to vector<8x128xf32>
    %5 = arith.addf %2, %4 : vector<8x128xf32>
    %c0_5 = arith.constant 0 : index
    %c0_6 = arith.constant 0 : index
    %6 = vector.load %arg4[%c0_5, %c0_6] : memref<8x128xf32, #tpu.memory_space<vmem>>, vector<8x128xf32>
    tpu.vector_store %arg4[%c0_5, %c0_6], %5 {strides = array<i32>} : memref<8x128xf32, #tpu.memory_space<vmem>>, vector<8x128xf32>,
    return
  }
  func.func @transform_0(%arg0: i32) -> (i32, i32) {
    %c0_i32 = arith.constant 0 : i32
    %c0_i32_0 = arith.constant 0 : i32
    return %arg0, %c0_i32 : i32, i32
  }
  func.func @transform_1(%arg0: i32) -> (i32, i32) {
    %c0_i32 = arith.constant 0 : i32
    %c0_i32_0 = arith.constant 0 : i32
    %c0_i32_1 = arith.constant 0 : i32
    return %c0_i32, %c0_i32_0 : i32, i32
  }
  func.func @transform_2(%arg0: i32) -> (i32, i32) {
    %c0_i32 = arith.constant 0 : i32
    %c0_i32_0 = arith.constant 0 : i32
    %c0_i32_1 = arith.constant 0 : i32
    return %c0_i32, %c0_i32_0 : i32, i32
  }
  func.func @transform_3(%arg0: i32) -> (i32, i32) {
    %c0_i32 = arith.constant 0 : i32
    %c0_i32_0 = arith.constant 0 : i32
    return %arg0, %c0_i32 : i32, i32
  }
}

</mosaic_0001>

<llo_original>
// kernel: aspect_classifier_forward.12
$region0: #{aspect_classifier_forward.12}
  #allocation0 [shape = 'u32[]', space=smem, size = 0x4, offset = 0x4, fixed_abs, tag = 'smem constant byte address 0x4 - core index']
  #allocation1 [shape = 'u32[72,128]{1,0:T(1,128)}', space=vmem, size = 0x9000, scoped, tag = 'internal scratch']
  %s0 = inlined_call_operand.vmem [shape: bf16[16,32], index: 0, kind: input, shape index: {}]
  %s1 = inlined_call_operand.vmem [shape: f32[1,32], index: 1, kind: input, shape index: {}]
  %s2 = inlined_call_operand.vmem [shape: f32[1,32], index: 2, kind: input, shape index: {}]
  %s3 = inlined_call_operand.vmem [shape: bf16[16,32], index: 3, kind: output, shape index: {}]
  %s4 = sld [smem:[#allocation0]]
  $region22: #{aspect_classifier_forward.12} parent=0
    _
  %s6 = ssub.s32 1, %s4
  %s7 = scalar_select 0, %s6, %s4
  // Predicated region
  $region2: #{aspect_classifier_forward.12} parent=0 // pred_check
    _
  $region3: #{aspect_classifier_forward.12} parent=0 // pred_check_branch
    %9 = sbr.rel (0) target = $region5
  $region4: #{aspect_classifier_forward.12} parent=0 // pred_region
    _
  $region5: #{aspect_classifier_forward.12} parent=0 // pred_fallthru
    _
  // Predicated region
  $region6: #{aspect_classifier_forward.12} parent=0 // pred_check
    _
  $region7: #{aspect_classifier_forward.12} parent=0 // pred_check_branch
    %11 = sbr.rel (0) target = $region9
  $region8: #{aspect_classifier_forward.12} parent=0 // pred_region
    _
  $region9: #{aspect_classifier_forward.12} parent=0 // pred_fallthru
    _
  // Predicated region
  $region10: #{aspect_classifier_forward.12} parent=0 // pred_check
    _
  $region11: #{aspect_classifier_forward.12} parent=0 // pred_check_branch
    %13 = sbr.rel (0) target = $region13
  $region12: #{aspect_classifier_forward.12} parent=0 // pred_region
    _
  $region13: #{aspect_classifier_forward.12} parent=0 // pred_fallthru
    _
  %v14 = vld [vmem:[%s0] sm:$0xf]
  %v15 = vld [vmem:[%s0 + $0x4] sm:$0xf]
  %v16 = vunpack.c.l.bf16 %v14
  %v17 = vunpack.c.l.bf16 %v15
  %vm18 = vcmask 261120
  %v19 = vsel %vm18, %v16, 0.0
  %20 = vadd.xlane.f32.xlu0 %v19
  %v21 = vpop.xlane.xlu0 %20
  %v22 = vsel %vm18, %v17, 0.0
  %23 = vadd.xlane.f32.xlu0 %v22
  %v24 = vpop.xlane.xlu0 %23
  %v25 = vrcp.pop 32.0
  %v26 = vmul.f32 32.0, %v25
  %v27 = vsub.f32 1.0, %v26
  %v28 = vmul.f32 %v25, %v27
  %v29 = vadd.f32 %v25, %v28
  %vm30 = vweird.f32 %v25
  %v31 = vsel %vm30, %v25, %v29
  %v32 = vmul.f32 %v21, %v31
  %v33 = vmul.f32 %v24, %v31
  %v34 = vsub.f32 %v16, %v32
  %v35 = vsub.f32 %v17, %v33
  %v36 = vmul.f32 %v34, %v34
  %v37 = vmul.f32 %v35, %v35
  %v38 = vsel %vm18, %v36, 0.0
  %39 = vadd.xlane.f32.xlu0 %v38
  %v40 = vpop.xlane.xlu0 %39
  %v41 = vsel %vm18, %v37, 0.0
  %42 = vadd.xlane.f32.xlu0 %v41
  %v43 = vpop.xlane.xlu0 %42
  %v44 = vmul.f32 %v40, %v31
  %v45 = vmul.f32 %v43, %v31
  %v46 = vadd.f32 %v44, 1e-12
  %v47 = vadd.f32 %v45, 1e-12
  %v48 = vrsqrt.pop %v46
  %v49 = vmul.f32 %v48, %v46
  %v50 = vmul.f32 %v49, %v48
  %v51 = vmul.f32 0.5, %v50
  %v52 = vsub.f32 1.5, %v51
  %v53 = vmul.f32 %v48, %v52
  %vm54 = vweird.f32 %v46
  %vm55 = vweird.f32 %v48
  %vm56 = vmor %vm54, %vm55
  %v57 = vsel %vm56, %v48, %v53
  %v58 = vrsqrt.pop %v47
  %v59 = vmul.f32 %v58, %v47
  %v60 = vmul.f32 %v59, %v58
  %v61 = vmul.f32 0.5, %v60
  %v62 = vsub.f32 1.5, %v61
  %v63 = vmul.f32 %v58, %v62
  %vm64 = vweird.f32 %v47
  %vm65 = vweird.f32 %v58
  %vm66 = vmor %vm64, %vm65
  %v67 = vsel %vm66, %v58, %v63
  %v68 = vmul.f32 %v34, %v57
  %v69 = vmul.f32 %v35, %v67
  %v70 = vld [vmem:[%s1] sm:$0x1]
  %v72 = vperm.slane %v70, 0
  %v74 = vmul.f32 %v68, %v72
  %v75 = vmul.f32 %v69, %v72
  %v76 = vld [vmem:[%s2] sm:$0x1]
  %v78 = vperm.slane %v76, 0
  %v80 = vadd.f32 %v74, %v78
  %v81 = vadd.f32 %v75, %v78
  %v82 = vpack.c.bf16 %v80, %v80
  %v83 = vpack.c.bf16 %v81, %v81
  %vm84 = vcmask 257024
  %85 = vst.msk [vmem:[%s3] sm:$0xf] %vm84, %v82
  %86 = vst.msk [vmem:[%s3 + $0x4] sm:$0xf] %vm84, %v83
  // Predicated region
  $region14: #{aspect_classifier_forward.12} parent=0 // pred_check
    _
  $region15: #{aspect_classifier_forward.12} parent=0 // pred_check_branch
    %88 = sbr.rel (0) target = $region17
  $region16: #{aspect_classifier_forward.12} parent=0 // pred_region
    _
  $region17: #{aspect_classifier_forward.12} parent=0 // pred_fallthru
    _
  // Predicated region
  $region18: #{aspect_classifier_forward.12} parent=0 // pred_check
    _
  $region19: #{aspect_classifier_forward.12} parent=0 // pred_check_branch
    %90 = sbr.rel (0) target = $region21
  $region20: #{aspect_classifier_forward.12} parent=0 // pred_region
    _
  $region21: #{aspect_classifier_forward.12} parent=0 // pred_fallthru
    _

// kernel: aspect_classifier_forward.13
$region0: #{aspect_classifier_forward.13}
  #allocation0 [shape = 'u32[]', space=smem, size = 0x4, offset = 0x4, fixed_abs, tag = 'smem constant byte address 0x4 - core index']
  #allocation1 [shape = 'u32[72,128]{1,0:T(1,128)}', space=vmem, size = 0x9000, scoped, tag = 'internal scratch']
  %s0 = inlined_call_operand.vmem [shape: bf16[16,32], index: 0, kind: input, shape index: {}]
  %s1 = inlined_call_operand.vmem [shape: bf16[32,96], index: 1, kind: input, shape index: {}]
  %s2 = inlined_call_operand.vmem [shape: f32[1,96], index: 2, kind: input, shape index: {}]
  %s3 = inlined_call_operand.vmem [shape: bf16[16,96], index: 3, kind: output, shape index: {}]
  %s4 = sld [smem:[#allocation0]]
  $region22: #{aspect_classifier_forward.13} parent=0
    _
  %s6 = ssub.s32 1, %s4
  %s7 = scalar_select 0, %s6, %s4
  // Predicated region
  $region2: #{aspect_classifier_forward.13} parent=0 // pred_check
    _
  $region3: #{aspect_classifier_forward.13} parent=0 // pred_check_branch
    %9 = sbr.rel (0) target = $region5
  $region4: #{aspect_classifier_forward.13} parent=0 // pred_region
    _
  $region5: #{aspect_classifier_forward.13} parent=0 // pred_fallthru
    _
  // Predicated region
  $region6: #{aspect_classifier_forward.13} parent=0 // pred_check
    _
  $region7: #{aspect_classifier_forward.13} parent=0 // pred_check_branch
    %11 = sbr.rel (0) target = $region9
  $region8: #{aspect_classifier_forward.13} parent=0 // pred_region
    _
  $region9: #{aspect_classifier_forward.13} parent=0 // pred_fallthru
    _
  // Predicated region
  $region10: #{aspect_classifier_forward.13} parent=0 // pred_check
    _
  $region11: #{aspect_classifier_forward.13} parent=0 // pred_check_branch
    %13 = sbr.rel (0) target = $region13
  $region12: #{aspect_classifier_forward.13} parent=0 // pred_region
    _
  $region13: #{aspect_classifier_forward.13} parent=0 // pred_fallthru
    _
  %v15 = vld [vmem:[%s0] sm:$0xf]
  %v16 = vld [vmem:[%s0 + $0x4] sm:$0xf]
  %v17 = vld [vmem:[%s1] sm:$0xf]
  %v18 = vld [vmem:[%s1 + $0x4] sm:$0xf]
  %v19 = vld [vmem:[%s1 + $0x8] sm:$0xf]
  %v20 = vld [vmem:[%s1 + $0xc] sm:$0xf]
  %v21 = vld [vmem:[%s2] sm:$0x1]
  %v23 = vperm.slane %v21, 0
  %v27 = vunpack.c.l.b16 %v15
  %v28 = vunpack.c.l.b16 %v16
  %v29 = vpack.c.b16 %v28, %v27
  %v34 = vunpack.c.l.b16 %v17
  %v35 = vunpack.c.l.b16 %v18
  %v36 = vunpack.c.l.b16 %v19
  %v37 = vunpack.c.l.b16 %v20
  %v38 = vpack.c.b16 %v35, %v34
  %v39 = vpack.c.b16 %v37, %v36
  %vm42 = vcmask 261120
  %v44 = vsel %vm42, %v29, 0
  %46 = vmatpush.bf16.msra.mxu0 0
  %47 = vmatpush.bf16.msra.mxu0 0
  %48 = vmatpush.bf16.msra.mxu0 0
  %49 = vmatpush.bf16.msra.mxu0 0
  %50 = vmatpush.bf16.msra.mxu0 0
  %51 = vmatpush.bf16.msra.mxu0 0
  %52 = vmatpush.bf16.msra.mxu0 %v39
  %53 = vmatpush.bf16.msra.mxu0 %v38
  %54 = vmatmul.bf16.gmra.mxu0 %v44
  %v55 = vpop.f32.mrf.mxu0
  %v56 = vadd.f32 %v23, %v55
  %v57 = vpop.f32.mrf.mxu0
  %v58 = vadd.f32 %v23, %v57
  %59 = vdwg.mxu0
  %v60 = vpack.c.bf16 %v56, %v56
  %v61 = vpack.c.bf16 %v58, %v58
  %vm62 = vcmask 781312
  %63 = vst.msk [vmem:[%s3] sm:$0xf] %vm62, %v60
  %64 = vst.msk [vmem:[%s3 + $0x4] sm:$0xf] %vm62, %v61
  // Predicated region
  $region14: #{aspect_classifier_forward.13} parent=0 // pred_check
    _
  $region15: #{aspect_classifier_forward.13} parent=0 // pred_check_branch
    %66 = sbr.rel (0) target = $region17
  $region16: #{aspect_classifier_forward.13} parent=0 // pred_region
    _
  $region17: #{aspect_classifier_forward.13} parent=0 // pred_fallthru
    _
  // Predicated region
  $region18: #{aspect_classifier_forward.13} parent=0 // pred_check
    _
  $region19: #{aspect_classifier_forward.13} parent=0 // pred_check_branch
    %68 = sbr.rel (0) target = $region21
  $region20: #{aspect_classifier_forward.13} parent=0 // pred_region
    _
  $region21: #{aspect_classifier_forward.13} parent=0 // pred_fallthru
    _

// kernel: aspect_classifier_forward.14
$region0: #{aspect_classifier_forward.14}
  #allocation0 [shape = 'u32[]', space=smem, size = 0x4, offset = 0x4, fixed_abs, tag = 'smem constant byte address 0x4 - core index']
  #allocation1 [shape = 'u32[72,128]{1,0:T(1,128)}', space=vmem, size = 0x9000, scoped, tag = 'internal scratch']
  %s0 = inlined_call_operand.vmem [shape: bf16[2,4,8,8], index: 0, kind: input, shape index: {}]
  %s1 = inlined_call_operand.vmem [shape: bf16[2,4,8,8], index: 1, kind: input, shape index: {}]
  %s2 = inlined_call_operand.vmem [shape: bf16[2,4,8,8], index: 2, kind: input, shape index: {}]
  %s3 = inlined_call_operand.vmem [shape: f32[2,1,8], index: 3, kind: input, shape index: {}]
  %s4 = inlined_call_operand.vmem [shape: bf16[2,4,8,8], index: 4, kind: output, shape index: {}]
  %s5 = sld [smem:[#allocation0]]
  $region49: #{aspect_classifier_forward.14} parent=0
    _
  %s7 = ssub.s32 1, %s5
  %s8 = scalar_select 0, %s7, %s5
  loop: start=0, step=1, limit=6
  $region2: #{aspect_classifier_forward.14} parent=0 // loop_pre_header
    _
  $region3: #{aspect_classifier_forward.14} parent=0 // loop_header
    %s10 = sphi 0, %s14
    %p11 = scmp.ge.s32.totalorder %s10, 6
    %s17 = sphi 0, %s29
    %s18 = sphi 0, %s25
    %s19 = sphi 0, %s17
    %s20 = sphi 0, %s18
    %s21 = sphi 0, %s19
    %s22 = sphi 0, %s20
    %s34 = sphi 0, %s36
    %s37 = sphi 0, %s34
    %s38 = sphi 0, %s37
    %s54 = sphi 0, %s38
    %s62 = sphi 0, %s64
    %s65 = sphi 0, %s62
    %s66 = sphi 0, %s65
    %s82 = sphi 0, %s66
    %s90 = sphi 0, %s92
    %s93 = sphi 0, %s90
    %s94 = sphi 0, %s93
    %s110 = sphi 0, %s94
    %s116 = sphi 0, %s118
    %s119 = sphi 0, %s116
    %s120 = sphi 0, %s119
    %s136 = sphi 0, %s120
    %s144 = sphi 0, %s146
    %s147 = sphi 0, %s144
    %s148 = sphi 0, %s147
    %s164 = sphi 0, %s148
  $region4: #{aspect_classifier_forward.14} parent=0 // loop_header_branch
    %13 = sbr.rel (%p11) target = $region8
  $region5: #{aspect_classifier_forward.14} parent=0 // loop_body
    %s15 = ssub.s32 %s10, 1
    %s16 = ssub.s32 %s10, 2
    %s23 = sadd.s32 1, %s18
    %p24 = scmp.ge.s32.totalorder %s23, 2
    %s25 = scalar_select %p24, 0, %s23
    %s26 = sadd.s32 1, %s17
    %s27 = scalar_select %p24, %s26, %s17
    %p28 = scmp.ge.s32.totalorder %s27, 2
    %s29 = scalar_select %p28, 0, %s27
    %s30 = ssub.s32 %s17, %s29
    %s31 = ssub.s32 %s18, %s25
    %s32 = sor.u32 %s30, %s31
    %p33 = scmp.eq.s32.totalorder %s32, 0
    %s35 = sadd.s32 %s34, 1
    %s36 = scalar_select %p33, %s34, %s35
    %p39 = pneg %p33
    %p40 = scmp.eq.s32.totalorder %s10, 3
    %p41 = por %p39, %p40
    %p42 = scmp.ne.s32.totalorder %s34, %s37
    %p43 = scmp.eq.s32.totalorder %s10, 0
    %p44 = por %p42, %p43
    %p45 = scmp.ne.s32.totalorder %s34, %s37
    %p46 = scmp.eq.s32.totalorder %s15, 3
    %p47 = por %p45, %p46
    %p48 = scmp.ne.s32.totalorder %s37, %s38
    %p49 = scmp.eq.s32.totalorder %s15, 0
    %p50 = por %p48, %p49
    %p51 = scmp.ne.s32.totalorder %s37, %s38
    %p52 = scmp.eq.s32.totalorder %s16, 3
    %p53 = por %p51, %p52
    %p55 = scmp.ne.s32.totalorder %s38, %s54
    %p56 = scmp.eq.s32.totalorder %s16, 0
    %p57 = por %p55, %p56
    %s58 = ssub.s32 %s17, %s29
    %s59 = ssub.s32 %s18, %s25
    %s60 = sor.u32 %s58, %s59
    %p61 = scmp.eq.s32.totalorder %s60, 0
    %s63 = sadd.s32 %s62, 1
    %s64 = scalar_select %p61, %s62, %s63
    %p67 = pneg %p61
    %p68 = scmp.eq.s32.totalorder %s10, 3
    %p69 = por %p67, %p68
    %p70 = scmp.ne.s32.totalorder %s62, %s65
    %p71 = scmp.eq.s32.totalorder %s10, 0
    %p72 = por %p70, %p71
    %p73 = scmp.ne.s32.totalorder %s62, %s65
    %p74 = scmp.eq.s32.totalorder %s15, 3
    %p75 = por %p73, %p74
    %p76 = scmp.ne.s32.totalorder %s65, %s66
    %p77 = scmp.eq.s32.totalorder %s15, 0
    %p78 = por %p76, %p77
    %p79 = scmp.ne.s32.totalorder %s65, %s66
    %p80 = scmp.eq.s32.totalorder %s16, 3
    %p81 = por %p79, %p80
    %p83 = scmp.ne.s32.totalorder %s66, %s82
    %p84 = scmp.eq.s32.totalorder %s16, 0
    %p85 = por %p83, %p84
    %s86 = ssub.s32 %s17, %s29
    %s87 = ssub.s32 %s18, %s25
    %s88 = sor.u32 %s86, %s87
    %p89 = scmp.eq.s32.totalorder %s88, 0
    %s91 = sadd.s32 %s90, 1
    %s92 = scalar_select %p89, %s90, %s91
    %p95 = pneg %p89
    %p96 = scmp.eq.s32.totalorder %s10, 3
    %p97 = por %p95, %p96
    %p98 = scmp.ne.s32.totalorder %s90, %s93
    %p99 = scmp.eq.s32.totalorder %s10, 0
    %p100 = por %p98, %p99
    %p101 = scmp.ne.s32.totalorder %s90, %s93
    %p102 = scmp.eq.s32.totalorder %s15, 3
    %p103 = por %p101, %p102
    %p104 = scmp.ne.s32.totalorder %s93, %s94
    %p105 = scmp.eq.s32.totalorder %s15, 0
    %p106 = por %p104, %p105
    %p107 = scmp.ne.s32.totalorder %s93, %s94
    %p108 = scmp.eq.s32.totalorder %s16, 3
    %p109 = por %p107, %p108
    %p111 = scmp.ne.s32.totalorder %s94, %s110
    %p112 = scmp.eq.s32.totalorder %s16, 0
    %p113 = por %p111, %p112
    %s114 = ssub.s32 %s17, %s29
    %p115 = scmp.eq.s32.totalorder %s114, 0
    %s117 = sadd.s32 %s116, 1
    %s118 = scalar_select %p115, %s116, %s117
    %p121 = pneg %p115
    %p122 = scmp.eq.s32.totalorder %s10, 3
    %p123 = por %p121, %p122
    %p124 = scmp.ne.s32.totalorder %s116, %s119
    %p125 = scmp.eq.s32.totalorder %s10, 0
    %p126 = por %p124, %p125
    %p127 = scmp.ne.s32.totalorder %s116, %s119
    %p128 = scmp.eq.s32.totalorder %s15, 3
    %p129 = por %p127, %p128
    %p130 = scmp.ne.s32.totalorder %s119, %s120
    %p131 = scmp.eq.s32.totalorder %s15, 0
    %p132 = por %p130, %p131
    %p133 = scmp.ne.s32.totalorder %s119, %s120
    %p134 = scmp.eq.s32.totalorder %s16, 3
    %p135 = por %p133, %p134
    %p137 = scmp.ne.s32.totalorder %s120, %s136
    %p138 = scmp.eq.s32.totalorder %s16, 0
    %p139 = por %p137, %p138
    %s140 = ssub.s32 %s17, %s29
    %s141 = ssub.s32 %s18, %s25
    %s142 = sor.u32 %s140, %s141
    %p143 = scmp.eq.s32.totalorder %s142, 0
    %s145 = sadd.s32 %s144, 1
    %s146 = scalar_select %p143, %s144, %s145
    %p149 = pneg %p143
    %p150 = scmp.eq.s32.totalorder %s10, 3
    %p151 = por %p149, %p150
    %p152 = scmp.ne.s32.totalorder %s144, %s147
    %p153 = scmp.eq.s32.totalorder %s10, 0
    %p154 = por %p152, %p153
    %p155 = scmp.ne.s32.totalorder %s144, %s147
    %p156 = scmp.eq.s32.totalorder %s15, 3
    %p157 = por %p155, %p156
    %p158 = scmp.ne.s32.totalorder %s147, %s148
    %p159 = scmp.eq.s32.totalorder %s15, 0
    %p160 = por %p158, %p159
    %p161 = scmp.ne.s32.totalorder %s147, %s148
    %p162 = scmp.eq.s32.totalorder %s16, 3
    %p163 = por %p161, %p162
    %p165 = scmp.ne.s32.totalorder %s148, %s164
    %p166 = scmp.eq.s32.totalorder %s16, 0
    %p167 = por %p165, %p166
    %p168 = scmp.le.s32.totalorder 1, %s10
    %p169 = scmp.lt.s32.totalorder %s10, 5
    %p170 = pnand %p168, %p169
    %p171 = pneg %p170
    // Predicated region
    $region9: #{aspect_classifier_forward.14} parent=5 // pred_check
      _
    $region10: #{aspect_classifier_forward.14} parent=5 // pred_check_branch
      %173 = sbr.rel (%p170) target = $region12
    $region11: #{aspect_classifier_forward.14} parent=5 // pred_region
      %s174 = ssub.s32 %s10, 1
    $region12: #{aspect_classifier_forward.14} parent=5 // pred_fallthru
      _
    %p175 = scmp.lt.s32.totalorder %s10, 4
    // Predicated region
    $region13: #{aspect_classifier_forward.14} parent=5 // pred_check
      %p176 = pneg %p175
    $region14: #{aspect_classifier_forward.14} parent=5 // pred_check_branch
      %178 = sbr.rel (%p176) target = $region16
    $region15: #{aspect_classifier_forward.14} parent=5 // pred_region
      // Predicated region
      $region17: #{aspect_classifier_forward.14} parent=15 // pred_check
        %p179 = pneg %p44
      $region18: #{aspect_classifier_forward.14} parent=15 // pred_check_branch
        %181 = sbr.rel (%p179) target = $region20
      $region19: #{aspect_classifier_forward.14} parent=15 // pred_region
        %s182 = smul.u32 2, %s18
        %p183 = scmp.lt.s32.totalorder %s17, 1
        %s184 = scalar_select %p183, %s17, 1
        %p185 = scmp.lt.s32.totalorder %s182, 3
        %s186 = scalar_select %p185, %s182, 3
        %s187 = smul.addr %s184, 4
        %s188 = sadd.s32 %s186, %s187
        %s189 = smul.addr %s188, 4
        %s190 = scalar_lea.vmem %s0, %s189
        %s191 = smul.u32 2, %s18
      $region20: #{aspect_classifier_forward.14} parent=15 // pred_fallthru
        _
      // Predicated region
      $region21: #{aspect_classifier_forward.14} parent=15 // pred_check
        %p192 = pneg %p72
      $region22: #{aspect_classifier_forward.14} parent=15 // pred_check_branch
        %194 = sbr.rel (%p192) target = $region24
      $region23: #{aspect_classifier_forward.14} parent=15 // pred_region
        %s195 = smul.u32 2, %s18
        %p196 = scmp.lt.s32.totalorder %s17, 1
        %s197 = scalar_select %p196, %s17, 1
        %p198 = scmp.lt.s32.totalorder %s195, 3
        %s199 = scalar_select %p198, %s195, 3
        %s200 = smul.addr %s197, 4
        %s201 = sadd.s32 %s199, %s200
        %s202 = smul.addr %s201, 4
        %s203 = scalar_lea.vmem %s1, %s202
        %s204 = smul.u32 2, %s18
      $region24: #{aspect_classifier_forward.14} parent=15 // pred_fallthru
        _
      // Predicated region
      $region25: #{aspect_classifier_forward.14} parent=15 // pred_check
        %p205 = pneg %p100
      $region26: #{aspect_classifier_forward.14} parent=15 // pred_check_branch
        %207 = sbr.rel (%p205) target = $region28
      $region27: #{aspect_classifier_forward.14} parent=15 // pred_region
        %s208 = smul.u32 2, %s18
        %p209 = scmp.lt.s32.totalorder %s17, 1
        %s210 = scalar_select %p209, %s17, 1
        %p211 = scmp.lt.s32.totalorder %s208, 3
        %s212 = scalar_select %p211, %s208, 3
        %s213 = smul.addr %s210, 4
        %s214 = sadd.s32 %s212, %s213
        %s215 = smul.addr %s214, 4
        %s216 = scalar_lea.vmem %s2, %s215
        %s217 = smul.u32 2, %s18
      $region28: #{aspect_classifier_forward.14} parent=15 // pred_fallthru
        _
      // Predicated region
      $region29: #{aspect_classifier_forward.14} parent=15 // pred_check
        %p218 = pneg %p126
      $region30: #{aspect_classifier_forward.14} parent=15 // pred_check_branch
        %220 = sbr.rel (%p218) target = $region32
      $region31: #{aspect_classifier_forward.14} parent=15 // pred_region
        %p221 = scmp.lt.s32.totalorder %s17, 1
        %s222 = scalar_select %p221, %s17, 1
        %s223 = scalar_lea.vmem %s3, %s222
      $region32: #{aspect_classifier_forward.14} parent=15 // pred_fallthru
        _
    $region16: #{aspect_classifier_forward.14} parent=5 // pred_fallthru
      _
    %p224 = scmp.le.s32.totalorder 1, %s10
    %p225 = scmp.lt.s32.totalorder %s10, 5
    %p226 = pnand %p224, %p225
    %p227 = pneg %p226
    // Predicated region
    $region33: #{aspect_classifier_forward.14} parent=5 // pred_check
      _
    $region34: #{aspect_classifier_forward.14} parent=5 // pred_check_branch
      %229 = sbr.rel (%p226) target = $region36
    $region35: #{aspect_classifier_forward.14} parent=5 // pred_region
      %s230 = ssub.s32 %s10, 1
      %s231 = smul.u32 2, %s20
      %p232 = scmp.lt.s32.totalorder %s19, 1
      %s233 = scalar_select %p232, %s19, 1
      %p234 = scmp.lt.s32.totalorder %s231, 3
      %s235 = scalar_select %p234, %s231, 3
      %s236 = smul.addr %s233, 4
      %s237 = sadd.s32 %s235, %s236
      %s238 = smul.addr %s237, 4
      %s239 = scalar_lea.vmem %s0, %s238
      %p240 = pneg %p50
      %p241 = pneg %p47
      %s242 = smul.u32 2, %s20
      %p243 = scmp.lt.s32.totalorder %s19, 1
      %s244 = scalar_select %p243, %s19, 1
      %p245 = scmp.lt.s32.totalorder %s242, 3
      %s246 = scalar_select %p245, %s242, 3
      %s247 = smul.addr %s244, 4
      %s248 = sadd.s32 %s246, %s247
      %s249 = smul.addr %s248, 4
      %s250 = scalar_lea.vmem %s1, %s249
      %p251 = pneg %p78
      %p252 = pneg %p75
      %s253 = smul.u32 2, %s20
      %p254 = scmp.lt.s32.totalorder %s19, 1
      %s255 = scalar_select %p254, %s19, 1
      %p256 = scmp.lt.s32.totalorder %s253, 3
      %s257 = scalar_select %p256, %s253, 3
      %s258 = smul.addr %s255, 4
      %s259 = sadd.s32 %s257, %s258
      %s260 = smul.addr %s259, 4
      %s261 = scalar_lea.vmem %s2, %s260
      %p262 = pneg %p106
      %p263 = pneg %p103
      %p264 = scmp.lt.s32.totalorder %s19, 1
      %s265 = scalar_select %p264, %s19, 1
      %s266 = scalar_lea.vmem %s3, %s265
      %p267 = pneg %p132
      %p268 = pneg %p129
      %p269 = pneg %p160
      %p270 = pneg %p157
      %s271 = smul.u32 2, %s20
      %p272 = scmp.lt.s32.totalorder %s19, 1
      %s273 = scalar_select %p272, %s19, 1
      %p274 = scmp.lt.s32.totalorder %s271, 3
      %s275 = scalar_select %p274, %s271, 3
      %s276 = smul.addr %s273, 4
      %s277 = sadd.s32 %s275, %s276
      %s278 = smul.addr %s277, 4
      %s279 = scalar_lea.vmem %s4, %s278
      %s280 = smul.u32 2, %s20
      %p281 = scmp.lt.s32.totalorder %s19, 1
      %s282 = scalar_select %p281, %s19, 1
      %p283 = scmp.lt.s32.totalorder %s280, 3
      %s284 = scalar_select %p283, %s280, 3
      %s285 = smul.addr %s282, 4
      %s286 = sadd.s32 %s284, %s285
      %s287 = smul.addr %s286, 4
      %s288 = scalar_lea.vmem %s0, %s287
      %s289 = smul.u32 2, %s20
      %s290 = smul.u32 2, %s20
      %p291 = scmp.lt.s32.totalorder %s19, 1
      %s292 = scalar_select %p291, %s19, 1
      %p293 = scmp.lt.s32.totalorder %s290, 3
      %s294 = scalar_select %p293, %s290, 3
      %s295 = smul.addr %s292, 4
      %s296 = sadd.s32 %s294, %s295
      %s297 = smul.addr %s296, 4
      %s298 = scalar_lea.vmem %s1, %s297
      %s299 = smul.u32 2, %s20
      %s300 = smul.u32 2, %s20
      %p301 = scmp.lt.s32.totalorder %s19, 1
      %s302 = scalar_select %p301, %s19, 1
      %p303 = scmp.lt.s32.totalorder %s300, 3
      %s304 = scalar_select %p303, %s300, 3
      %s305 = smul.addr %s302, 4
      %s306 = sadd.s32 %s304, %s305
      %s307 = smul.addr %s306, 4
      %s308 = scalar_lea.vmem %s2, %s307
      %s309 = smul.u32 2, %s20
      %p310 = scmp.lt.s32.totalorder %s19, 1
      %s311 = scalar_select %p310, %s19, 1
      %s312 = scalar_lea.vmem %s3, %s311
      %s313 = smul.u32 2, %s20
      %p314 = scmp.lt.s32.totalorder %s19, 1
      %s315 = scalar_select %p314, %s19, 1
      %p316 = scmp.lt.s32.totalorder %s313, 3
      %s317 = scalar_select %p316, %s313, 3
      %s318 = smul.addr %s315, 4
      %s319 = sadd.s32 %s317, %s318
      %s320 = smul.addr %s319, 4
      %s321 = scalar_lea.vmem %s4, %s320
      %s322 = smul.u32 2, %s20
      %v324 = vld [vmem:[%s288] sm:$0xf]
      %v325 = vld [vmem:[%s288 + $0x4] sm:$0xf]
      %v326 = vld [vmem:[%s298] sm:$0xf]
      %v327 = vld [vmem:[%s298 + $0x4] sm:$0xf]
      %v328 = vld [vmem:[%s308] sm:$0xf]
      %v329 = vld [vmem:[%s308 + $0x4] sm:$0xf]
      %v330 = vld [vmem:[%s312] sm:$0x1]
      %v332 = vperm.slane %v330, 0
      %vm334 = vcmask 64512
      %v336 = vsel %vm334, %v324, 0
      %v339 = vsel %vm334, %v326, 0
      %341 = vmatpush.bf16.xpose.msra.mxu0 0
      %342 = vmatpush.bf16.xpose.msra.mxu0 0
      %343 = vmatpush.bf16.xpose.msra.mxu0 0
      %344 = vmatpush.bf16.xpose.msra.mxu0 0
      %345 = vmatpush.bf16.xpose.msra.mxu0 0
      %346 = vmatpush.bf16.xpose.msra.mxu0 0
      %347 = vmatpush.bf16.xpose.msra.mxu0 0
      %348 = vmatpush.bf16.xpose.msra.mxu0 %v339
      %349 = vmatmul.bf16.gmra.mxu0 %v336
      %v350 = vpop.f32.mrf.mxu0
      %v351 = vadd.f32 %v332, %v350
      %v352 = vpop.f32.mrf.mxu0
      %353 = vdwg.mxu0
      %v355 = vsel %vm334, %v325, 0
      %v358 = vsel %vm334, %v327, 0
      %360 = vmatpush.bf16.xpose.msra.mxu0 0
      %361 = vmatpush.bf16.xpose.msra.mxu0 0
      %362 = vmatpush.bf16.xpose.msra.mxu0 0
      %363 = vmatpush.bf16.xpose.msra.mxu0 0
      %364 = vmatpush.bf16.xpose.msra.mxu0 0
      %365 = vmatpush.bf16.xpose.msra.mxu0 0
      %366 = vmatpush.bf16.xpose.msra.mxu0 0
      %367 = vmatpush.bf16.xpose.msra.mxu0 %v358
      %368 = vmatmul.bf16.gmra.mxu0 %v355
      %v369 = vpop.f32.mrf.mxu0
      %v370 = vadd.f32 %v332, %v369
      %v371 = vpop.f32.mrf.mxu0
      %372 = vdwg.mxu0
      %v373 = vsel %vm334, %v351, -inf
      %374 = vmax.xlane.f32.xlu0 %v373
      %v375 = vpop.xlane.xlu0 %374
      %v376 = vsel %vm334, %v370, -inf
      %377 = vmax.xlane.f32.xlu0 %v376
      %v378 = vpop.xlane.xlu0 %377
      %v379 = vsub.f32 %v351, %v375
      %v380 = vsub.f32 %v370, %v378
      %v381 = vmul.f32 %v379, 1.442695
      %v382 = vpow.pop %v381
      %v383 = vmul.f32 %v380, 1.442695
      %v384 = vpow.pop %v383
      %v385 = vsel %vm334, %v382, 0.0
      %386 = vadd.xlane.f32.xlu0 %v385
      %v387 = vpop.xlane.xlu0 %386
      %v388 = vsel %vm334, %v384, 0.0
      %389 = vadd.xlane.f32.xlu0 %v388
      %v390 = vpop.xlane.xlu0 %389
      %v391 = vrcp.pop %v387
      %v392 = vmul.f32 %v387, %v391
      %v393 = vsub.f32 1.0, %v392
      %v394 = vmul.f32 %v391, %v393
      %v395 = vadd.f32 %v391, %v394
      %vm396 = vweird.f32 %v387
      %vm397 = vweird.f32 %v391
      %vm398 = vmor %vm396, %vm397
      %v399 = vsel %vm398, %v391, %v395
      %v400 = vand.u32 2147483647, %v387
      %vm401 = vcmp.eq.f32.partialorder %v400, 8.507059e+37
      %v402 = vand.u32 %v387, 2147483648
      %v403 = vor.u32 1.1754944e-38, %v402
      %v404 = vsel %vm401, %v403, %v399
      %v405 = vmul.f32 %v382, %v404
      %v406 = vrcp.pop %v390
      %v407 = vmul.f32 %v390, %v406
      %v408 = vsub.f32 1.0, %v407
      %v409 = vmul.f32 %v406, %v408
      %v410 = vadd.f32 %v406, %v409
      %vm411 = vweird.f32 %v390
      %vm412 = vweird.f32 %v406
      %vm413 = vmor %vm411, %vm412
      %v414 = vsel %vm413, %v406, %v410
      %v415 = vand.u32 2147483647, %v390
      %vm416 = vcmp.eq.f32.partialorder %v415, 8.507059e+37
      %v417 = vand.u32 %v390, 2147483648
      %v418 = vor.u32 1.1754944e-38, %v417
      %v419 = vsel %vm416, %v418, %v414
      %v420 = vmul.f32 %v384, %v419
      %v421 = vpack.c.bf16 %v405, %v405
      %v422 = vpack.c.bf16 %v420, %v420
      %v424 = vsel %vm334, %v421, 0
      %vm426 = vcmask 1043456
      %v428 = vsel %vm426, %v328, 0
      %430 = vmatpush.bf16.msra.mxu0 0
      %431 = vmatpush.bf16.msra.mxu0 0
      %432 = vmatpush.bf16.msra.mxu0 0
      %433 = vmatpush.bf16.msra.mxu0 0
      %434 = vmatpush.bf16.msra.mxu0 0
      %435 = vmatpush.bf16.msra.mxu0 0
      %436 = vmatpush.bf16.msra.mxu0 0
      %437 = vmatpush.bf16.msra.mxu0 %v428
      %438 = vmatmul.bf16.gmra.mxu0 %v424
      %v439 = vpop.f32.mrf.mxu0
      %v440 = vadd.f32 0.0, %v439
      %v441 = vpop.f32.mrf.mxu0
      %442 = vdwg.mxu0
      %v444 = vsel %vm334, %v422, 0
      %v447 = vsel %vm426, %v329, 0
      %449 = vmatpush.bf16.msra.mxu0 0
      %450 = vmatpush.bf16.msra.mxu0 0
      %451 = vmatpush.bf16.msra.mxu0 0
      %452 = vmatpush.bf16.msra.mxu0 0
      %453 = vmatpush.bf16.msra.mxu0 0
      %454 = vmatpush.bf16.msra.mxu0 0
      %455 = vmatpush.bf16.msra.mxu0 0
      %456 = vmatpush.bf16.msra.mxu0 %v447
      %457 = vmatmul.bf16.gmra.mxu0 %v444
      %v458 = vpop.f32.mrf.mxu0
      %v459 = vadd.f32 0.0, %v458
      %v460 = vpop.f32.mrf.mxu0
      %461 = vdwg.mxu0
      %v462 = vpack.c.bf16 %v440, %v440
      %v463 = vpack.c.bf16 %v459, %v459
      %vm464 = vcmask 60416
      %465 = vst.msk [vmem:[%s321] sm:$0xf] %vm464, %v462
      %466 = vst.msk [vmem:[%s321 + $0x4] sm:$0xf] %vm464, %v463
      %s467 = smul.u32 2, %s20
      %p468 = scmp.lt.s32.totalorder %s19, 1
      %s469 = scalar_select %p468, %s19, 1
      %p470 = scmp.lt.s32.totalorder %s467, 3
      %s471 = scalar_select %p470, %s467, 3
      %s472 = smul.addr %s469, 4
      %s473 = sadd.s32 %s471, %s472
      %s474 = smul.addr %s473, 4
      %s475 = scalar_lea.vmem %s4, %s474
      // Predicated region
      $region37: #{aspect_classifier_forward.14} parent=35 // pred_check
        %p476 = pneg %p157
      $region38: #{aspect_classifier_forward.14} parent=35 // pred_check_branch
        %478 = sbr.rel (%p476) target = $region40
      $region39: #{aspect_classifier_forward.14} parent=35 // pred_region
        %s479 = smul.u32 2, %s20
      $region40: #{aspect_classifier_forward.14} parent=35 // pred_fallthru
        _
    $region36: #{aspect_classifier_forward.14} parent=5 // pred_fallthru
      _
    %p480 = scmp.le.s32.totalorder 2, %s10
    // Predicated region
    $region41: #{aspect_classifier_forward.14} parent=5 // pred_check
      %p481 = pneg %p480
    $region42: #{aspect_classifier_forward.14} parent=5 // pred_check_branch
      %483 = sbr.rel (%p481) target = $region44
    $region43: #{aspect_classifier_forward.14} parent=5 // pred_region
      %s484 = ssub.s32 %s10, 2
      // Predicated region
      $region45: #{aspect_classifier_forward.14} parent=43 // pred_check
        %p485 = pneg %p163
      $region46: #{aspect_classifier_forward.14} parent=43 // pred_check_branch
        %487 = sbr.rel (%p485) target = $region48
      $region47: #{aspect_classifier_forward.14} parent=43 // pred_region
        %s488 = smul.u32 2, %s22
        %p489 = scmp.lt.s32.totalorder %s21, 1
        %s490 = scalar_select %p489, %s21, 1
        %p491 = scmp.lt.s32.totalorder %s488, 3
        %s492 = scalar_select %p491, %s488, 3
        %s493 = smul.addr %s490, 4
        %s494 = sadd.s32 %s492, %s493
        %s495 = smul.addr %s494, 4
        %s496 = scalar_lea.vmem %s4, %s495
      $region48: #{aspect_classifier_forward.14} parent=43 // pred_fallthru
        _
    $region44: #{aspect_classifier_forward.14} parent=5 // pred_fallthru
      _
  $region6: #{aspect_classifier_forward.14} parent=0 // loop_footer
    %s14 = sadd.s32 1, %s10
  $region7: #{aspect_classifier_forward.14} parent=0 // loop_footer_branch
    %9 = sbr.rel target = $region3
  $region8: #{aspect_classifier_forward.14} parent=0 // loop_exit
    _

// kernel: aspect_classifier_forward.15
$region0: #{aspect_classifier_forward.15}
  #allocation0 [shape = 'u32[]', space=smem, size = 0x4, offset = 0x4, fixed_abs, tag = 'smem constant byte address 0x4 - core index']
  #allocation1 [shape = 'u32[72,128]{1,0:T(1,128)}', space=vmem, size = 0x9000, scoped, tag = 'internal scratch']
  #allocation2 [shape = 'f32[16,32]{1,0:T(8,128)}', space=vmem, size = 0x2000, scoped, tag = 'scratch operand']
  %s0 = inlined_call_operand.vmem [shape: bf16[16,32], index: 0, kind: input, shape index: {}]
  %s1 = inlined_call_operand.vmem [shape: bf16[32,32], index: 1, kind: input, shape index: {}]
  %s2 = inlined_call_operand.vmem [shape: f32[1,32], index: 2, kind: input, shape index: {}]
  %s3 = inlined_call_operand.vmem [shape: bf16[16,32], index: 3, kind: input, shape index: {}]
  %s4 = inlined_call_operand.vmem [shape: f32[1,32], index: 4, kind: input, shape index: {}]
  %s5 = inlined_call_operand.vmem [shape: f32[1,32], index: 5, kind: input, shape index: {}]
  %s6 = inlined_call_operand.vmem [shape: bf16[16,32], index: 6, kind: output, shape index: {}]
  %s7 = sld [smem:[#allocation0]]
  $region42: #{aspect_classifier_forward.15} parent=0
    _
  %s9 = ssub.s32 1, %s7
  %s10 = scalar_select 0, %s9, %s7
  // Predicated region
  $region2: #{aspect_classifier_forward.15} parent=0 // pred_check
    _
  $region3: #{aspect_classifier_forward.15} parent=0 // pred_check_branch
    %12 = sbr.rel (0) target = $region5
  $region4: #{aspect_classifier_forward.15} parent=0 // pred_region
    _
  $region5: #{aspect_classifier_forward.15} parent=0 // pred_fallthru
    _
  // Predicated region
  $region6: #{aspect_classifier_forward.15} parent=0 // pred_check
    _
  $region7: #{aspect_classifier_forward.15} parent=0 // pred_check_branch
    %14 = sbr.rel (0) target = $region9
  $region8: #{aspect_classifier_forward.15} parent=0 // pred_region
    _
  $region9: #{aspect_classifier_forward.15} parent=0 // pred_fallthru
    _
  // Predicated region
  $region10: #{aspect_classifier_forward.15} parent=0 // pred_check
    _
  $region11: #{aspect_classifier_forward.15} parent=0 // pred_check_branch
    %16 = sbr.rel (0) target = $region13
  $region12: #{aspect_classifier_forward.15} parent=0 // pred_region
    _
  $region13: #{aspect_classifier_forward.15} parent=0 // pred_fallthru
    _
  // Predicated region
  $region14: #{aspect_classifier_forward.15} parent=0 // pred_check
    _
  $region15: #{aspect_classifier_forward.15} parent=0 // pred_check_branch
    %18 = sbr.rel (0) target = $region17
  $region16: #{aspect_classifier_forward.15} parent=0 // pred_region
    _
  $region17: #{aspect_classifier_forward.15} parent=0 // pred_fallthru
    _
  // Predicated region
  $region18: #{aspect_classifier_forward.15} parent=0 // pred_check
    _
  $region19: #{aspect_classifier_forward.15} parent=0 // pred_check_branch
    %20 = sbr.rel (0) target = $region21
  $region20: #{aspect_classifier_forward.15} parent=0 // pred_region
    _
  $region21: #{aspect_classifier_forward.15} parent=0 // pred_fallthru
    _
  // Predicated region
  $region22: #{aspect_classifier_forward.15} parent=0 // pred_check
    _
  $region23: #{aspect_classifier_forward.15} parent=0 // pred_check_branch
    %22 = sbr.rel (0) target = $region25
  $region24: #{aspect_classifier_forward.15} parent=0 // pred_region
    _
  $region25: #{aspect_classifier_forward.15} parent=0 // pred_fallthru
    _
  %p24 = scmp.eq.s32.totalorder 0, 0
  // Predicated region
  $region26: #{aspect_classifier_forward.15} parent=0 // pred_check
    %p25 = pneg %p24
  $region27: #{aspect_classifier_forward.15} parent=0 // pred_check_branch
    %27 = sbr.rel (%p25) target = $region29
  $region28: #{aspect_classifier_forward.15} parent=0 // pred_region
    %vm28 = vcmask 261120
    %29 = vst.msk [vmem:[#allocation2] sm:$0xff] %vm28, 0.0
    %30 = vst.msk [vmem:[#allocation2 + $0x8] sm:$0xff] %vm28, 0.0
  $region29: #{aspect_classifier_forward.15} parent=0 // pred_fallthru
    _
  %v31 = vld [vmem:[#allocation2] sm:$0xff]
  %v32 = vld [vmem:[#allocation2 + $0x8] sm:$0xff]
  %v33 = vld [vmem:[%s0] sm:$0xf]
  %v34 = vld [vmem:[%s0 + $0x4] sm:$0xf]
  %v35 = vld [vmem:[%s1] sm:$0xf]
  %v36 = vld [vmem:[%s1 + $0x4] sm:$0xf]
  %v37 = vld [vmem:[%s1 + $0x8] sm:$0xf]
  %v38 = vld [vmem:[%s1 + $0xc] sm:$0xf]
  %v41 = vunpack.c.l.b16 %v33
  %v42 = vunpack.c.l.b16 %v34
  %v43 = vpack.c.b16 %v42, %v41
  %v48 = vunpack.c.l.b16 %v35
  %v49 = vunpack.c.l.b16 %v36
  %v50 = vunpack.c.l.b16 %v37
  %v51 = vunpack.c.l.b16 %v38
  %v52 = vpack.c.b16 %v49, %v48
  %v53 = vpack.c.b16 %v51, %v50
  %vm56 = vcmask 261120
  %v58 = vsel %vm56, %v43, 0
  %60 = vmatpush.bf16.msra.mxu0 0
  %61 = vmatpush.bf16.msra.mxu0 0
  %62 = vmatpush.bf16.msra.mxu0 0
  %63 = vmatpush.bf16.msra.mxu0 0
  %64 = vmatpush.bf16.msra.mxu0 0
  %65 = vmatpush.bf16.msra.mxu0 0
  %66 = vmatpush.bf16.msra.mxu0 %v53
  %67 = vmatpush.bf16.msra.mxu0 %v52
  %68 = vmatmul.bf16.gmra.mxu0 %v58
  %v69 = vpop.f32.mrf.mxu0
  %v70 = vadd.f32 0.0, %v69
  %v71 = vpop.f32.mrf.mxu0
  %v72 = vadd.f32 0.0, %v71
  %73 = vdwg.mxu0
  %v74 = vadd.f32 %v31, %v70
  %v75 = vadd.f32 %v32, %v72
  %76 = vst.msk [vmem:[#allocation2] sm:$0xff] %vm56, %v74
  %77 = vst.msk [vmem:[#allocation2 + $0x8] sm:$0xff] %vm56, %v75
  // Predicated region
  $region30: #{aspect_classifier_forward.15} parent=0 // pred_check
    %p78 = pneg %p24
  $region31: #{aspect_classifier_forward.15} parent=0 // pred_check_branch
    %80 = sbr.rel (%p78) target = $region33
  $region32: #{aspect_classifier_forward.15} parent=0 // pred_region
    %v81 = vld [vmem:[#allocation2] sm:$0xff]
    %v82 = vld [vmem:[#allocation2 + $0x8] sm:$0xff]
    %v83 = vld [vmem:[%s2] sm:$0x1]
    %v85 = vperm.slane %v83, 0
    %v87 = vadd.f32 %v81, %v85
    %v88 = vadd.f32 %v82, %v85
    %v89 = vld [vmem:[%s3] sm:$0xf]
    %v90 = vld [vmem:[%s3 + $0x4] sm:$0xf]
    %v91 = vunpack.c.l.bf16 %v89
    %v92 = vunpack.c.l.bf16 %v90
    %v93 = vadd.f32 %v87, %v91
    %v94 = vadd.f32 %v88, %v92
    %v95 = vsel %vm56, %v93, 0.0
    %96 = vadd.xlane.f32.xlu0 %v95
    %v97 = vpop.xlane.xlu0 %96
    %v98 = vsel %vm56, %v94, 0.0
    %99 = vadd.xlane.f32.xlu0 %v98
    %v100 = vpop.xlane.xlu0 %99
    %v101 = vrcp.pop 32.0
    %v102 = vmul.f32 32.0, %v101
    %v103 = vsub.f32 1.0, %v102
    %v104 = vmul.f32 %v101, %v103
    %v105 = vadd.f32 %v101, %v104
    %vm106 = vweird.f32 %v101
    %v107 = vsel %vm106, %v101, %v105
    %v108 = vmul.f32 %v97, %v107
    %v109 = vmul.f32 %v100, %v107
    %v110 = vsub.f32 %v93, %v108
    %v111 = vsub.f32 %v94, %v109
    %v112 = vmul.f32 %v110, %v110
    %v113 = vmul.f32 %v111, %v111
    %v114 = vsel %vm56, %v112, 0.0
    %115 = vadd.xlane.f32.xlu0 %v114
    %v116 = vpop.xlane.xlu0 %115
    %v117 = vsel %vm56, %v113, 0.0
    %118 = vadd.xlane.f32.xlu0 %v117
    %v119 = vpop.xlane.xlu0 %118
    %v120 = vmul.f32 %v116, %v107
    %v121 = vmul.f32 %v119, %v107
    %v122 = vadd.f32 %v120, 1e-12
    %v123 = vadd.f32 %v121, 1e-12
    %v124 = vrsqrt.pop %v122
    %v125 = vmul.f32 %v124, %v122
    %v126 = vmul.f32 %v125, %v124
    %v127 = vmul.f32 0.5, %v126
    %v128 = vsub.f32 1.5, %v127
    %v129 = vmul.f32 %v124, %v128
    %vm130 = vweird.f32 %v122
    %vm131 = vweird.f32 %v124
    %vm132 = vmor %vm130, %vm131
    %v133 = vsel %vm132, %v124, %v129
    %v134 = vrsqrt.pop %v123
    %v135 = vmul.f32 %v134, %v123
    %v136 = vmul.f32 %v135, %v134
    %v137 = vmul.f32 0.5, %v136
    %v138 = vsub.f32 1.5, %v137
    %v139 = vmul.f32 %v134, %v138
    %vm140 = vweird.f32 %v123
    %vm141 = vweird.f32 %v134
    %vm142 = vmor %vm140, %vm141
    %v143 = vsel %vm142, %v134, %v139
    %v144 = vmul.f32 %v110, %v133
    %v145 = vmul.f32 %v111, %v143
    %v146 = vld [vmem:[%s4] sm:$0x1]
    %v148 = vperm.slane %v146, 0
    %v150 = vmul.f32 %v144, %v148
    %v151 = vmul.f32 %v145, %v148
    %v152 = vld [vmem:[%s5] sm:$0x1]
    %v154 = vperm.slane %v152, 0
    %v156 = vadd.f32 %v150, %v154
    %v157 = vadd.f32 %v151, %v154
    %v158 = vpack.c.bf16 %v156, %v156
    %v159 = vpack.c.bf16 %v157, %v157
    %vm160 = vcmask 257024
    %161 = vst.msk [vmem:[%s6] sm:$0xf] %vm160, %v158
    %162 = vst.msk [vmem:[%s6 + $0x4] sm:$0xf] %vm160, %v159
  $region33: #{aspect_classifier_forward.15} parent=0 // pred_fallthru
    _
  // Predicated region
  $region34: #{aspect_classifier_forward.15} parent=0 // pred_check
    _
  $region35: #{aspect_classifier_forward.15} parent=0 // pred_check_branch
    %164 = sbr.rel (0) target = $region37
  $region36: #{aspect_classifier_forward.15} parent=0 // pred_region
    _
  $region37: #{aspect_classifier_forward.15} parent=0 // pred_fallthru
    _
  // Predicated region
  $region38: #{aspect_classifier_forward.15} parent=0 // pred_check
    _
  $region39: #{aspect_classifier_forward.15} parent=0 // pred_check_branch
    %166 = sbr.rel (0) target = $region41
  $region40: #{aspect_classifier_forward.15} parent=0 // pred_region
    _
  $region41: #{aspect_classifier_forward.15} parent=0 // pred_fallthru
    _

// kernel: aspect_classifier_forward.17
$region0: #{aspect_classifier_forward.17}
  #allocation0 [shape = 'u32[]', space=smem, size = 0x4, offset = 0x4, fixed_abs, tag = 'smem constant byte address 0x4 - core index']
  #allocation1 [shape = 'u32[72,128]{1,0:T(1,128)}', space=vmem, size = 0x9000, scoped, tag = 'internal scratch']
  #allocation2 [shape = 'f32[16,32]{1,0:T(8,128)}', space=vmem, size = 0x2000, scoped, tag = 'scratch operand']
  %s0 = inlined_call_operand.vmem [shape: bf16[16,64], index: 0, kind: input, shape index: {}]
  %s1 = inlined_call_operand.vmem [shape: bf16[64,32], index: 1, kind: input, shape index: {}]
  %s2 = inlined_call_operand.vmem [shape: f32[1,32], index: 2, kind: input, shape index: {}]
  %s3 = inlined_call_operand.vmem [shape: bf16[16,32], index: 3, kind: input, shape index: {}]
  %s4 = inlined_call_operand.vmem [shape: f32[1,32], index: 4, kind: input, shape index: {}]
  %s5 = inlined_call_operand.vmem [shape: f32[1,32], index: 5, kind: input, shape index: {}]
  %s6 = inlined_call_operand.vmem [shape: bf16[16,32], index: 6, kind: output, shape index: {}]
  %s7 = sld [smem:[#allocation0]]
  $region42: #{aspect_classifier_forward.17} parent=0
    _
  %s9 = ssub.s32 1, %s7
  %s10 = scalar_select 0, %s9, %s7
  // Predicated region
  $region2: #{aspect_classifier_forward.17} parent=0 // pred_check
    _
  $region3: #{aspect_classifier_forward.17} parent=0 // pred_check_branch
    %12 = sbr.rel (0) target = $region5
  $region4: #{aspect_classifier_forward.17} parent=0 // pred_region
    _
  $region5: #{aspect_classifier_forward.17} parent=0 // pred_fallthru
    _
  // Predicated region
  $region6: #{aspect_classifier_forward.17} parent=0 // pred_check
    _
  $region7: #{aspect_classifier_forward.17} parent=0 // pred_check_branch
    %14 = sbr.rel (0) target = $region9
  $region8: #{aspect_classifier_forward.17} parent=0 // pred_region
    _
  $region9: #{aspect_classifier_forward.17} parent=0 // pred_fallthru
    _
  // Predicated region
  $region10: #{aspect_classifier_forward.17} parent=0 // pred_check
    _
  $region11: #{aspect_classifier_forward.17} parent=0 // pred_check_branch
    %16 = sbr.rel (0) target = $region13
  $region12: #{aspect_classifier_forward.17} parent=0 // pred_region
    _
  $region13: #{aspect_classifier_forward.17} parent=0 // pred_fallthru
    _
  // Predicated region
  $region14: #{aspect_classifier_forward.17} parent=0 // pred_check
    _
  $region15: #{aspect_classifier_forward.17} parent=0 // pred_check_branch
    %18 = sbr.rel (0) target = $region17
  $region16: #{aspect_classifier_forward.17} parent=0 // pred_region
    _
  $region17: #{aspect_classifier_forward.17} parent=0 // pred_fallthru
    _
  // Predicated region
  $region18: #{aspect_classifier_forward.17} parent=0 // pred_check
    _
  $region19: #{aspect_classifier_forward.17} parent=0 // pred_check_branch
    %20 = sbr.rel (0) target = $region21
  $region20: #{aspect_classifier_forward.17} parent=0 // pred_region
    _
  $region21: #{aspect_classifier_forward.17} parent=0 // pred_fallthru
    _
  // Predicated region
  $region22: #{aspect_classifier_forward.17} parent=0 // pred_check
    _
  $region23: #{aspect_classifier_forward.17} parent=0 // pred_check_branch
    %22 = sbr.rel (0) target = $region25
  $region24: #{aspect_classifier_forward.17} parent=0 // pred_region
    _
  $region25: #{aspect_classifier_forward.17} parent=0 // pred_fallthru
    _
  %p24 = scmp.eq.s32.totalorder 0, 0
  // Predicated region
  $region26: #{aspect_classifier_forward.17} parent=0 // pred_check
    %p25 = pneg %p24
  $region27: #{aspect_classifier_forward.17} parent=0 // pred_check_branch
    %27 = sbr.rel (%p25) target = $region29
  $region28: #{aspect_classifier_forward.17} parent=0 // pred_region
    %vm28 = vcmask 261120
    %29 = vst.msk [vmem:[#allocation2] sm:$0xff] %vm28, 0.0
    %30 = vst.msk [vmem:[#allocation2 + $0x8] sm:$0xff] %vm28, 0.0
  $region29: #{aspect_classifier_forward.17} parent=0 // pred_fallthru
    _
  %v31 = vld [vmem:[#allocation2] sm:$0xff]
  %v32 = vld [vmem:[#allocation2 + $0x8] sm:$0xff]
  %v33 = vld [vmem:[%s0] sm:$0xf]
  %v34 = vld [vmem:[%s0 + $0x4] sm:$0xf]
  %v35 = vld [vmem:[%s1] sm:$0xf]
  %v36 = vld [vmem:[%s1 + $0x4] sm:$0xf]
  %v37 = vld [vmem:[%s1 + $0x8] sm:$0xf]
  %v38 = vld [vmem:[%s1 + $0xc] sm:$0xf]
  %v39 = vld [vmem:[%s1 + $0x10] sm:$0xf]
  %v40 = vld [vmem:[%s1 + $0x14] sm:$0xf]
  %v41 = vld [vmem:[%s1 + $0x18] sm:$0xf]
  %v42 = vld [vmem:[%s1 + $0x1c] sm:$0xf]
  %v45 = vunpack.c.l.b16 %v33
  %v46 = vunpack.c.l.b16 %v34
  %v47 = vpack.c.b16 %v46, %v45
  %v56 = vunpack.c.l.b16 %v35
  %v57 = vunpack.c.l.b16 %v36
  %v58 = vunpack.c.l.b16 %v37
  %v59 = vunpack.c.l.b16 %v38
  %v60 = vunpack.c.l.b16 %v39
  %v61 = vunpack.c.l.b16 %v40
  %v62 = vunpack.c.l.b16 %v41
  %v63 = vunpack.c.l.b16 %v42
  %v64 = vpack.c.b16 %v57, %v56
  %v65 = vpack.c.b16 %v59, %v58
  %v66 = vpack.c.b16 %v61, %v60
  %v67 = vpack.c.b16 %v63, %v62
  %vm72 = vcmask 523264
  %v74 = vsel %vm72, %v47, 0
  %76 = vmatpush.bf16.msra.mxu0 0
  %77 = vmatpush.bf16.msra.mxu0 0
  %78 = vmatpush.bf16.msra.mxu0 0
  %79 = vmatpush.bf16.msra.mxu0 0
  %80 = vmatpush.bf16.msra.mxu0 %v67
  %81 = vmatpush.bf16.msra.mxu0 %v66
  %82 = vmatpush.bf16.msra.mxu0 %v65
  %83 = vmatpush.bf16.msra.mxu0 %v64
  %84 = vmatmul.bf16.gmra.mxu0 %v74
  %v85 = vpop.f32.mrf.mxu0
  %v86 = vadd.f32 0.0, %v85
  %v87 = vpop.f32.mrf.mxu0
  %v88 = vadd.f32 0.0, %v87
  %89 = vdwg.mxu0
  %v90 = vadd.f32 %v31, %v86
  %v91 = vadd.f32 %v32, %v88
  %vm92 = vcmask 261120
  %93 = vst.msk [vmem:[#allocation2] sm:$0xff] %vm92, %v90
  %94 = vst.msk [vmem:[#allocation2 + $0x8] sm:$0xff] %vm92, %v91
  // Predicated region
  $region30: #{aspect_classifier_forward.17} parent=0 // pred_check
    %p95 = pneg %p24
  $region31: #{aspect_classifier_forward.17} parent=0 // pred_check_branch
    %97 = sbr.rel (%p95) target = $region33
  $region32: #{aspect_classifier_forward.17} parent=0 // pred_region
    %v98 = vld [vmem:[#allocation2] sm:$0xff]
    %v99 = vld [vmem:[#allocation2 + $0x8] sm:$0xff]
    %v100 = vld [vmem:[%s2] sm:$0x1]
    %v102 = vperm.slane %v100, 0
    %v104 = vadd.f32 %v98, %v102
    %v105 = vadd.f32 %v99, %v102
    %v106 = vld [vmem:[%s3] sm:$0xf]
    %v107 = vld [vmem:[%s3 + $0x4] sm:$0xf]
    %v108 = vunpack.c.l.bf16 %v106
    %v109 = vunpack.c.l.bf16 %v107
    %v110 = vadd.f32 %v104, %v108
    %v111 = vadd.f32 %v105, %v109
    %v112 = vsel %vm92, %v110, 0.0
    %113 = vadd.xlane.f32.xlu0 %v112
    %v114 = vpop.xlane.xlu0 %113
    %v115 = vsel %vm92, %v111, 0.0
    %116 = vadd.xlane.f32.xlu0 %v115
    %v117 = vpop.xlane.xlu0 %116
    %v118 = vrcp.pop 32.0
    %v119 = vmul.f32 32.0, %v118
    %v120 = vsub.f32 1.0, %v119
    %v121 = vmul.f32 %v118, %v120
    %v122 = vadd.f32 %v118, %v121
    %vm123 = vweird.f32 %v118
    %v124 = vsel %vm123, %v118, %v122
    %v125 = vmul.f32 %v114, %v124
    %v126 = vmul.f32 %v117, %v124
    %v127 = vsub.f32 %v110, %v125
    %v128 = vsub.f32 %v111, %v126
    %v129 = vmul.f32 %v127, %v127
    %v130 = vmul.f32 %v128, %v128
    %v131 = vsel %vm92, %v129, 0.0
    %132 = vadd.xlane.f32.xlu0 %v131
    %v133 = vpop.xlane.xlu0 %132
    %v134 = vsel %vm92, %v130, 0.0
    %135 = vadd.xlane.f32.xlu0 %v134
    %v136 = vpop.xlane.xlu0 %135
    %v137 = vmul.f32 %v133, %v124
    %v138 = vmul.f32 %v136, %v124
    %v139 = vadd.f32 %v137, 1e-12
    %v140 = vadd.f32 %v138, 1e-12
    %v141 = vrsqrt.pop %v139
    %v142 = vmul.f32 %v141, %v139
    %v143 = vmul.f32 %v142, %v141
    %v144 = vmul.f32 0.5, %v143
    %v145 = vsub.f32 1.5, %v144
    %v146 = vmul.f32 %v141, %v145
    %vm147 = vweird.f32 %v139
    %vm148 = vweird.f32 %v141
    %vm149 = vmor %vm147, %vm148
    %v150 = vsel %vm149, %v141, %v146
    %v151 = vrsqrt.pop %v140
    %v152 = vmul.f32 %v151, %v140
    %v153 = vmul.f32 %v152, %v151
    %v154 = vmul.f32 0.5, %v153
    %v155 = vsub.f32 1.5, %v154
    %v156 = vmul.f32 %v151, %v155
    %vm157 = vweird.f32 %v140
    %vm158 = vweird.f32 %v151
    %vm159 = vmor %vm157, %vm158
    %v160 = vsel %vm159, %v151, %v156
    %v161 = vmul.f32 %v127, %v150
    %v162 = vmul.f32 %v128, %v160
    %v163 = vld [vmem:[%s4] sm:$0x1]
    %v165 = vperm.slane %v163, 0
    %v167 = vmul.f32 %v161, %v165
    %v168 = vmul.f32 %v162, %v165
    %v169 = vld [vmem:[%s5] sm:$0x1]
    %v171 = vperm.slane %v169, 0
    %v173 = vadd.f32 %v167, %v171
    %v174 = vadd.f32 %v168, %v171
    %v175 = vpack.c.bf16 %v173, %v173
    %v176 = vpack.c.bf16 %v174, %v174
    %vm177 = vcmask 257024
    %178 = vst.msk [vmem:[%s6] sm:$0xf] %vm177, %v175
    %179 = vst.msk [vmem:[%s6 + $0x4] sm:$0xf] %vm177, %v176
  $region33: #{aspect_classifier_forward.17} parent=0 // pred_fallthru
    _
  // Predicated region
  $region34: #{aspect_classifier_forward.17} parent=0 // pred_check
    _
  $region35: #{aspect_classifier_forward.17} parent=0 // pred_check_branch
    %181 = sbr.rel (0) target = $region37
  $region36: #{aspect_classifier_forward.17} parent=0 // pred_region
    _
  $region37: #{aspect_classifier_forward.17} parent=0 // pred_fallthru
    _
  // Predicated region
  $region38: #{aspect_classifier_forward.17} parent=0 // pred_check
    _
  $region39: #{aspect_classifier_forward.17} parent=0 // pred_check_branch
    %183 = sbr.rel (0) target = $region41
  $region40: #{aspect_classifier_forward.17} parent=0 // pred_region
    _
  $region41: #{aspect_classifier_forward.17} parent=0 // pred_fallthru
    _

// kernel: aspect_classifier_forward.16
$region0: #{aspect_classifier_forward.16}
  #allocation0 [shape = 'u32[]', space=smem, size = 0x4, offset = 0x4, fixed_abs, tag = 'smem constant byte address 0x4 - core index']
  #allocation1 [shape = 'u32[72,128]{1,0:T(1,128)}', space=vmem, size = 0x9000, scoped, tag = 'internal scratch']
  %s0 = inlined_call_operand.vmem [shape: bf16[16,32], index: 0, kind: input, shape index: {}]
  %s1 = inlined_call_operand.vmem [shape: bf16[32,64], index: 1, kind: input, shape index: {}]
  %s2 = inlined_call_operand.vmem [shape: f32[1,64], index: 2, kind: input, shape index: {}]
  %s3 = inlined_call_operand.vmem [shape: bf16[16,64], index: 3, kind: output, shape index: {}]
  %s4 = sld [smem:[#allocation0]]
  $region22: #{aspect_classifier_forward.16} parent=0
    _
  %s6 = ssub.s32 1, %s4
  %s7 = scalar_select 0, %s6, %s4
  // Predicated region
  $region2: #{aspect_classifier_forward.16} parent=0 // pred_check
    _
  $region3: #{aspect_classifier_forward.16} parent=0 // pred_check_branch
    %9 = sbr.rel (0) target = $region5
  $region4: #{aspect_classifier_forward.16} parent=0 // pred_region
    _
  $region5: #{aspect_classifier_forward.16} parent=0 // pred_fallthru
    _
  // Predicated region
  $region6: #{aspect_classifier_forward.16} parent=0 // pred_check
    _
  $region7: #{aspect_classifier_forward.16} parent=0 // pred_check_branch
    %11 = sbr.rel (0) target = $region9
  $region8: #{aspect_classifier_forward.16} parent=0 // pred_region
    _
  $region9: #{aspect_classifier_forward.16} parent=0 // pred_fallthru
    _
  // Predicated region
  $region10: #{aspect_classifier_forward.16} parent=0 // pred_check
    _
  $region11: #{aspect_classifier_forward.16} parent=0 // pred_check_branch
    %13 = sbr.rel (0) target = $region13
  $region12: #{aspect_classifier_forward.16} parent=0 // pred_region
    _
  $region13: #{aspect_classifier_forward.16} parent=0 // pred_fallthru
    _
  %v15 = vld [vmem:[%s0] sm:$0xf]
  %v16 = vld [vmem:[%s0 + $0x4] sm:$0xf]
  %v17 = vld [vmem:[%s1] sm:$0xf]
  %v18 = vld [vmem:[%s1 + $0x4] sm:$0xf]
  %v19 = vld [vmem:[%s1 + $0x8] sm:$0xf]
  %v20 = vld [vmem:[%s1 + $0xc] sm:$0xf]
  %v21 = vld [vmem:[%s2] sm:$0x1]
  %v23 = vperm.slane %v21, 0
  %v27 = vunpack.c.l.b16 %v15
  %v28 = vunpack.c.l.b16 %v16
  %v29 = vpack.c.b16 %v28, %v27
  %v34 = vunpack.c.l.b16 %v17
  %v35 = vunpack.c.l.b16 %v18
  %v36 = vunpack.c.l.b16 %v19
  %v37 = vunpack.c.l.b16 %v20
  %v38 = vpack.c.b16 %v35, %v34
  %v39 = vpack.c.b16 %v37, %v36
  %vm42 = vcmask 261120
  %v44 = vsel %vm42, %v29, 0
  %46 = vmatpush.bf16.msra.mxu0 0
  %47 = vmatpush.bf16.msra.mxu0 0
  %48 = vmatpush.bf16.msra.mxu0 0
  %49 = vmatpush.bf16.msra.mxu0 0
  %50 = vmatpush.bf16.msra.mxu0 0
  %51 = vmatpush.bf16.msra.mxu0 0
  %52 = vmatpush.bf16.msra.mxu0 %v39
  %53 = vmatpush.bf16.msra.mxu0 %v38
  %54 = vmatmul.bf16.gmra.mxu0 %v44
  %v55 = vpop.f32.mrf.mxu0
  %v56 = vadd.f32 %v23, %v55
  %v57 = vpop.f32.mrf.mxu0
  %v58 = vadd.f32 %v23, %v57
  %59 = vdwg.mxu0
  %v60 = vmul.f32 %v56, %v56
  %v61 = vmul.f32 %v58, %v58
  %v62 = vmul.f32 %v56, %v60
  %v63 = vmul.f32 %v58, %v61
  %v64 = vmul.f32 %v62, 0.044715
  %v65 = vmul.f32 %v63, 0.044715
  %v66 = vadd.f32 %v56, %v64
  %v67 = vadd.f32 %v58, %v65
  %v68 = vmul.f32 %v66, 0.7978846
  %v69 = vmul.f32 %v67, 0.7978846
  %v70 = vtanh.pop %v68
  %v71 = vtanh.pop %v69
  %v72 = vadd.f32 %v70, 1.0
  %v73 = vadd.f32 %v71, 1.0
  %v74 = vmul.f32 %v72, 0.5
  %v75 = vmul.f32 %v73, 0.5
  %v76 = vmul.f32 %v56, %v74
  %v77 = vmul.f32 %v58, %v75
  %v78 = vpack.c.bf16 %v76, %v76
  %v79 = vpack.c.bf16 %v77, %v77
  %vm80 = vcmask 519168
  %81 = vst.msk [vmem:[%s3] sm:$0xf] %vm80, %v78
  %82 = vst.msk [vmem:[%s3 + $0x4] sm:$0xf] %vm80, %v79
  // Predicated region
  $region14: #{aspect_classifier_forward.16} parent=0 // pred_check
    _
  $region15: #{aspect_classifier_forward.16} parent=0 // pred_check_branch
    %84 = sbr.rel (0) target = $region17
  $region16: #{aspect_classifier_forward.16} parent=0 // pred_region
    _
  $region17: #{aspect_classifier_forward.16} parent=0 // pred_fallthru
    _
  // Predicated region
  $region18: #{aspect_classifier_forward.16} parent=0 // pred_check
    _
  $region19: #{aspect_classifier_forward.16} parent=0 // pred_check_branch
    %86 = sbr.rel (0) target = $region21
  $region20: #{aspect_classifier_forward.16} parent=0 // pred_region
    _
  $region21: #{aspect_classifier_forward.16} parent=0 // pred_fallthru
    _

// kernel: aspect_classifier_forward.23
$region0: #{aspect_classifier_forward.23}
  #allocation0 [shape = 'u32[]', space=smem, size = 0x4, offset = 0x4, fixed_abs, tag = 'smem constant byte address 0x4 - core index']
  #allocation1 [shape = 'u32[72,128]{1,0:T(1,128)}', space=vmem, size = 0x9000, scoped, tag = 'internal scratch']
  %s0 = inlined_call_operand.vmem [shape: bf16[8,32], index: 0, kind: input, shape index: {}]
  %s1 = inlined_call_operand.vmem [shape: bf16[32,128], index: 1, kind: input, shape index: {}]
  %s2 = inlined_call_operand.vmem [shape: f32[1,128], index: 2, kind: input, shape index: {}]
  %s3 = inlined_call_operand.vmem [shape: f32[8,128], index: 3, kind: output, shape index: {}]
  %s4 = sld [smem:[#allocation0]]
  $region22: #{aspect_classifier_forward.23} parent=0
    _
  %s6 = ssub.s32 1, %s4
  %s7 = scalar_select 0, %s6, %s4
  // Predicated region
  $region2: #{aspect_classifier_forward.23} parent=0 // pred_check
    _
  $region3: #{aspect_classifier_forward.23} parent=0 // pred_check_branch
    %9 = sbr.rel (0) target = $region5
  $region4: #{aspect_classifier_forward.23} parent=0 // pred_region
    _
  $region5: #{aspect_classifier_forward.23} parent=0 // pred_fallthru
    _
  // Predicated region
  $region6: #{aspect_classifier_forward.23} parent=0 // pred_check
    _
  $region7: #{aspect_classifier_forward.23} parent=0 // pred_check_branch
    %11 = sbr.rel (0) target = $region9
  $region8: #{aspect_classifier_forward.23} parent=0 // pred_region
    _
  $region9: #{aspect_classifier_forward.23} parent=0 // pred_fallthru
    _
  // Predicated region
  $region10: #{aspect_classifier_forward.23} parent=0 // pred_check
    _
  $region11: #{aspect_classifier_forward.23} parent=0 // pred_check_branch
    %13 = sbr.rel (0) target = $region13
  $region12: #{aspect_classifier_forward.23} parent=0 // pred_region
    _
  $region13: #{aspect_classifier_forward.23} parent=0 // pred_fallthru
    _
  %v15 = vld [vmem:[%s0] sm:$0xf]
  %v16 = vld [vmem:[%s1] sm:$0xf]
  %v17 = vld [vmem:[%s1 + $0x4] sm:$0xf]
  %v18 = vld [vmem:[%s1 + $0x8] sm:$0xf]
  %v19 = vld [vmem:[%s1 + $0xc] sm:$0xf]
  %v20 = vld [vmem:[%s2] sm:$0x1]
  %v22 = vperm.slane %v20, 0
  %v28 = vunpack.c.l.b16 %v16
  %v29 = vunpack.c.l.b16 %v17
  %v30 = vunpack.c.l.b16 %v18
  %v31 = vunpack.c.l.b16 %v19
  %v32 = vpack.c.b16 %v29, %v28
  %v33 = vpack.c.b16 %v31, %v30
  %vm36 = vcmask 261120
  %v38 = vsel %vm36, %v15, 0
  %40 = vmatpush.bf16.msra.mxu0 0
  %41 = vmatpush.bf16.msra.mxu0 0
  %42 = vmatpush.bf16.msra.mxu0 0
  %43 = vmatpush.bf16.msra.mxu0 0
  %44 = vmatpush.bf16.msra.mxu0 0
  %45 = vmatpush.bf16.msra.mxu0 0
  %46 = vmatpush.bf16.msra.mxu0 %v33
  %47 = vmatpush.bf16.msra.mxu0 %v32
  %48 = vmatmul.bf16.gmra.mxu0 %v38
  %v49 = vpop.f32.mrf.mxu0
  %v50 = vadd.f32 %v22, %v49
  %v51 = vpop.f32.mrf.mxu0
  %52 = vdwg.mxu0
  %53 = vst [vmem:[%s3] sm:$0xff] %v50
  // Predicated region
  $region14: #{aspect_classifier_forward.23} parent=0 // pred_check
    _
  $region15: #{aspect_classifier_forward.23} parent=0 // pred_check_branch
    %55 = sbr.rel (0) target = $region17
  $region16: #{aspect_classifier_forward.23} parent=0 // pred_region
    _
  $region17: #{aspect_classifier_forward.23} parent=0 // pred_fallthru
    _
  // Predicated region
  $region18: #{aspect_classifier_forward.23} parent=0 // pred_check
    _
  $region19: #{aspect_classifier_forward.23} parent=0 // pred_check_branch
    %57 = sbr.rel (0) target = $region21
  $region20: #{aspect_classifier_forward.23} parent=0 // pred_region
    _
  $region21: #{aspect_classifier_forward.23} parent=0 // pred_fallthru
    _

</llo_original>
